<compile_context>
chip_gen: v7x
topology: tpu7x:2x2x1
jax: 0.10.0
libtpu: 0.0.40
codegen_flags: <defaults>
</compile_context>

<pallas_src>
import functools

import jax
import jax.numpy as jnp
from jax import lax
from jax.experimental import pallas as pl
from jax.experimental.pallas import tpu as pltpu

BN_EPS = 1e-5
_VMEM_LIMIT = 32 * 1024 * 1024  # explicit scoped-VMEM budget; fits v5e/v6e/v7x


def _round_up(x, m):
    return (x + m - 1) // m * m


# ---------------------------------------------------------------------------
# Kernel 1: fused [conv 3x3 s2 p1 + BN + ReLU] -> [conv 3x3 s1 p1 + BN + ReLU]
# One grid step == one image; the intermediate activation y1 never leaves VMEM.
# ---------------------------------------------------------------------------
def _stem_kernel(a1_ref, w1_ref, b1_ref, w2_ref, b2_ref, y2_ref, y1pad_ref,
                 *, H1, W1, mid, pad):
    M1 = H1 * W1

    # ---- stage 1: (pre-im2col'd) matmul + folded-BN bias + ReLU ----
    y1 = jnp.dot(a1_ref[...], w1_ref[...], preferred_element_type=jnp.float32)
    y1 = jnp.maximum(y1 + b1_ref[...], 0.0)

    # Store into a row-padded VMEM scratch; the zero halo rows provide the
    # h-direction "same" padding of the stage-2 conv for free.
    y1pad_ref[0:pad, :] = jnp.zeros((pad, mid), y1pad_ref.dtype)
    y1pad_ref[pad + M1:pad + M1 + pad, :] = jnp.zeros((pad, mid), y1pad_ref.dtype)
    y1pad_ref[pad:pad + M1, :] = y1.astype(y1pad_ref.dtype)

    # ---- stage 2: 3x3 stride-1 "same" conv as 9 shifted-row matmuls ----
    # Row r of the (M1, mid) activation matrix is pixel (h, w) = divmod(r, W1);
    # tap (di, dj) reads row r + di*W1 + dj, masked where w + dj leaves [0, W1).
    w_idx = lax.broadcasted_iota(jnp.int32, (M1, 1), 0) % W1
    acc = jnp.zeros((M1, mid), jnp.float32)
    taps = [(di, dj) for di in (-1, 0, 1) for dj in (-1, 0, 1)]
    for t, (di, dj) in enumerate(taps):
        start = pad + di * W1 + dj                       # static, >= 0 by construction
        shifted = y1pad_ref[pl.ds(start, M1), :]
        if dj == -1:
            shifted = jnp.where(w_idx >= 1, shifted, jnp.zeros_like(shifted))
        elif dj == 1:
            shifted = jnp.where(w_idx <= W1 - 2, shifted, jnp.zeros_like(shifted))
        acc += jnp.dot(shifted, w2_ref[t], preferred_element_type=jnp.float32)

    y2 = jnp.maximum(acc + b2_ref[...], 0.0)
    y2_ref[...] = y2.astype(y2_ref.dtype)


def _fused_stem(a1, w1m, b1f, w2taps, b2f, *, H1, W1, mid, compute_dtype):
    B, M1, K1 = a1.shape
    pad = _round_up(W1 + 1, 8)  # zero halo rows above/below the image (>= W1 + 1)
    kernel = functools.partial(_stem_kernel, H1=H1, W1=W1, mid=mid, pad=pad)
    return pl.pallas_call(
        kernel,
        out_shape=jax.ShapeDtypeStruct((B, M1, mid), compute_dtype),
        grid_spec=pltpu.PrefetchScalarGridSpec(
            num_scalar_prefetch=0,
            grid=(B,),
            in_specs=[
                pl.BlockSpec((None, M1, K1), lambda b: (b, 0, 0)),
                pl.BlockSpec((K1, mid), lambda b: (0, 0)),        # weights stay resident
                pl.BlockSpec((1, mid), lambda b: (0, 0)),
                pl.BlockSpec((9, mid, mid), lambda b: (0, 0, 0)),
                pl.BlockSpec((1, mid), lambda b: (0, 0)),
            ],
            out_specs=pl.BlockSpec((None, M1, mid), lambda b: (b, 0, 0)),
            scratch_shapes=[pltpu.VMEM((M1 + 2 * pad, mid), compute_dtype)],
        ),
        compiler_params=pltpu.CompilerParams(
            dimension_semantics=("parallel",),       # v7x: images split across 2 TCs
            vmem_limit_bytes=_VMEM_LIMIT,
        ),
    )(a1, w1m, b1f, w2taps, b2f)


# ---------------------------------------------------------------------------
# Kernel 2: M/K-tiled  (A @ W) + bias   (used for the patchify projection)
# ---------------------------------------------------------------------------
def _proj_kernel(a_ref, w_ref, b_ref, o_ref, acc_ref):
    @pl.when(pl.program_id(1) == 0)
    def _():
        acc_ref[...] = jnp.zeros_like(acc_ref)

    acc_ref[...] += jnp.dot(a_ref[...], w_ref[...],
                            preferred_element_type=jnp.float32)

    @pl.when(pl.program_id(1) == pl.num_programs(1) - 1)
    def _():
        o_ref[...] = (acc_ref[...] + b_ref[...]).astype(o_ref.dtype)


def _matmul_bias(a, w, bias, *, out_dtype, tm=512, tk=512):
    """(a @ w) + bias with an M-tiled ("parallel") / K-tiled ("arbitrary") grid."""
    M, K = a.shape
    N = w.shape[1]
    tm = min(tm, _round_up(M, 8))
    tk = min(tk, _round_up(K, 128))
    Mp, Kp = _round_up(M, tm), _round_up(K, tk)
    if Mp != M or Kp != K:
        a = jnp.pad(a, ((0, Mp - M), (0, Kp - K)))
    if Kp != K:
        w = jnp.pad(w, ((0, Kp - K), (0, 0)))

    out = pl.pallas_call(
        _proj_kernel,
        out_shape=jax.ShapeDtypeStruct((Mp, N), out_dtype),
        grid_spec=pltpu.PrefetchScalarGridSpec(
            num_scalar_prefetch=0,
            grid=(Mp // tm, Kp // tk),
            in_specs=[
                pl.BlockSpec((tm, tk), lambda i, k: (i, k)),
                pl.BlockSpec((tk, N), lambda i, k: (k, 0)),
                pl.BlockSpec((1, N), lambda i, k: (0, 0)),
            ],
            out_specs=pl.BlockSpec((tm, N), lambda i, k: (i, 0)),
            scratch_shapes=[pltpu.VMEM((tm, N), jnp.float32)],
        ),
        compiler_params=pltpu.CompilerParams(
            dimension_semantics=("parallel", "arbitrary"),
            vmem_limit_bytes=_VMEM_LIMIT,
        ),
    )(a, w, bias)
    return out[:M] if Mp != M else out


# ---------------------------------------------------------------------------
# Plain-JAX glue (cheap, zero- or low-inflation layout prep)
# ---------------------------------------------------------------------------
def _im2col_3x3_s2(x_nhwc):
    """3x3 / stride 2 / pad 1 patch extraction of the raw image (C_in is tiny)."""
    B, H, W, C = x_nhwc.shape
    xp = jnp.pad(x_nhwc, ((0, 0), (1, 1), (1, 1), (0, 0)))
    Ho, Wo = (H + 1) // 2, (W + 1) // 2
    cols = []
    for i in range(3):
        for j in range(3):
            cols.append(xp[:, i:i + 2 * Ho:2, j:j + 2 * Wo:2, :])
    a = jnp.stack(cols, axis=3)                       # (B, Ho, Wo, 9, C)
    return a.reshape(B, Ho * Wo, 9 * C), Ho, Wo


def _space_to_depth(y_nhwc, k):
    """kernel == stride conv input prep: no duplication, pure relayout."""
    B, H, W, C = y_nhwc.shape
    Hg, Wg = H // k, W // k
    y = y_nhwc.reshape(B, Hg, k, Wg, k, C)
    y = jnp.transpose(y, (0, 1, 3, 2, 4, 5))
    return y.reshape(B * Hg * Wg, k * k * C), Hg, Wg


def _conv_w_to_mat(w_oihw):
    O, C, kh, kw = w_oihw.shape
    return jnp.transpose(w_oihw, (2, 3, 1, 0)).reshape(kh * kw * C, O)


def _fold_bn(w_mat, b_conv, gamma, beta, mean, var):
    """Fold eval-mode BatchNorm into the conv weight columns / bias."""
    s = gamma / jnp.sqrt(var + BN_EPS)
    return w_mat * s[None, :], (b_conv - mean) * s + beta


# ---------------------------------------------------------------------------
# PatchEmbed forward (use_resnet_stem=True), Pallas-backed
# ---------------------------------------------------------------------------
def patch_embed_forward(x_nchw, params, patch_size, *, compute_dtype=jnp.bfloat16):
    B = x_nchw.shape[0]
    x = jnp.transpose(x_nchw, (0, 2, 3, 1)).astype(jnp.float32)  # NCHW -> NHWC

    mid = params["w1"].shape[0]
    embed = params["w3"].shape[0]
    k3 = patch_size // 2

    # stage-1 prep: cheap im2col of the raw image + BN fold into weights
    a1, H1, W1 = _im2col_3x3_s2(x)
    w1m, b1f = _fold_bn(_conv_w_to_mat(params["w1"]), params["b1"],
                        params["g1"], params["be1"], params["m1"], params["v1"])

    # stage-2 prep: per-tap (cin, cout) weight matrices, BN fold
    s2 = params["g2"] / jnp.sqrt(params["v2"] + BN_EPS)
    w2taps = jnp.transpose(params["w2"], (2, 3, 1, 0)).reshape(9, mid, mid)
    w2taps = w2taps * s2[None, None, :]
    b2f = (params["b2"] - params["m2"]) * s2 + params["be2"]

    # fused stage 1+2 kernel (y1 stays in VMEM, y2 written once to HBM)
    y2 = _fused_stem(a1.astype(compute_dtype),
                     w1m.astype(compute_dtype),
                     b1f.reshape(1, mid).astype(jnp.float32),
                     w2taps.astype(compute_dtype),
                     b2f.reshape(1, mid).astype(jnp.float32),
                     H1=H1, W1=W1, mid=mid, compute_dtype=compute_dtype)

    # stage 3: kernel == stride -> zero-duplication space-to-depth + tiled matmul
    a3, Hg, Wg = _space_to_depth(y2.reshape(B, H1, W1, mid), k3)
    w3m = _conv_w_to_mat(params["w3"]).astype(compute_dtype)
    b3 = params["b3"].reshape(1, embed).astype(jnp.float32)
    y3 = _matmul_bias(a3, w3m, b3, out_dtype=jnp.float32)

    # flatten(2).transpose(1,2): rows are already in (b, gh, gw) row-major order.
    return y3.reshape(B, Hg * Wg, embed)


def patch_embed_forward_simple(x_nchw, w, b, patch_size, *,
                               compute_dtype=jnp.bfloat16):
    """use_resnet_stem=False path: single patchify conv (kernel == stride)."""
    B = x_nchw.shape[0]
    x = jnp.transpose(x_nchw, (0, 2, 3, 1)).astype(compute_dtype)
    a, Hg, Wg = _space_to_depth(x, patch_size)
    wm = _conv_w_to_mat(w).astype(compute_dtype)
    y = _matmul_bias(a, wm, b.reshape(1, -1).astype(jnp.float32),
                     out_dtype=jnp.float32)
    return y.reshape(B, Hg * Wg, w.shape[0])


# ---------------------------------------------------------------------------
# Pure-JAX reference (lax.conv, NCHW) for correctness check
# ---------------------------------------------------------------------------
def _conv_nchw(x, w, b, stride, pad):
    out = lax.conv_general_dilated(
        x, w, (stride, stride), [(pad, pad), (pad, pad)],
        dimension_numbers=("NCHW", "OIHW", "NCHW"))
    return out + b[None, :, None, None]


def _bn_eval(x, gamma, beta, mean, var):
    inv = gamma / jnp.sqrt(var + BN_EPS)
    return ((x - mean[None, :, None, None]) * inv[None, :, None, None]
            + beta[None, :, None, None])


def patch_embed_reference(x, params, patch_size):
    y = _conv_nchw(x, params["w1"], params["b1"], 2, 1)
    y = jax.nn.relu(_bn_eval(y, params["g1"], params["be1"], params["m1"], params["v1"]))
    y = _conv_nchw(y, params["w2"], params["b2"], 1, 1)
    y = jax.nn.relu(_bn_eval(y, params["g2"], params["be2"], params["m2"], params["v2"]))
    k3 = patch_size // 2
    y = _conv_nchw(y, params["w3"], params["b3"], k3, 0)
    B, E, Hg, Wg = y.shape
    return jnp.transpose(y.reshape(B, E, Hg * Wg), (0, 2, 1))


def patch_embed_simple_reference(x, w, b, patch_size):
    y = _conv_nchw(x, w, b, patch_size, 0)
    B, E, Hg, Wg = y.shape
    return jnp.transpose(y.reshape(B, E, Hg * Wg), (0, 2, 1))


# ---------------------------------------------------------------------------
if __name__ == "__main__":
    # Small config consistent with the module: img=16, patch=8, in_chans=3, embed_dim=32
    B, C, IMG, PATCH, EMBED = 2, 3, 16, 8, 32
    MID = EMBED // 2
    K3 = PATCH // 2

    key = jax.random.PRNGKey(0)
    ks = jax.random.split(key, 14)
    params = {
        "w1": 0.1 * jax.random.normal(ks[0], (MID, C, 3, 3), jnp.float32),
        "b1": 0.1 * jax.random.normal(ks[1], (MID,), jnp.float32),
        "g1": 1.0 + 0.05 * jax.random.normal(ks[2], (MID,), jnp.float32),
        "be1": 0.05 * jax.random.normal(ks[3], (MID,), jnp.float32),
        "m1": 0.05 * jax.random.normal(ks[10], (MID,), jnp.float32),
        "v1": 1.0 + 0.1 * jnp.abs(jax.random.normal(ks[11], (MID,), jnp.float32)),
        "w2": 0.1 * jax.random.normal(ks[4], (MID, MID, 3, 3), jnp.float32),
        "b2": 0.1 * jax.random.normal(ks[5], (MID,), jnp.float32),
        "g2": 1.0 + 0.05 * jax.random.normal(ks[6], (MID,), jnp.float32),
        "be2": 0.05 * jax.random.normal(ks[7], (MID,), jnp.float32),
        "m2": 0.05 * jax.random.normal(ks[12], (MID,), jnp.float32),
        "v2": 1.0 + 0.1 * jnp.abs(jax.random.normal(ks[13], (MID,), jnp.float32)),
        "w3": 0.1 * jax.random.normal(ks[8], (EMBED, MID, K3, K3), jnp.float32),
        "b3": 0.1 * jax.random.normal(ks[9], (EMBED,), jnp.float32),
    }

    x = jax.random.normal(jax.random.PRNGKey(1), (B, C, IMG, IMG), jnp.float32)
    num_patches = (IMG // PATCH) ** 2

    ref = jax.block_until_ready(patch_embed_reference(x, params, PATCH))

    # Exact path: f32 operands, tight tolerance.
    out_f32 = jax.block_until_ready(
        patch_embed_forward(x, params, PATCH, compute_dtype=jnp.float32))
    assert out_f32.shape == (B, num_patches, EMBED), out_f32.shape
    assert jnp.allclose(out_f32, ref, rtol=1e-3, atol=1e-3), \
        float(jnp.max(jnp.abs(out_f32 - ref)))

    # Fast path (production default): bf16 operands / f32 accumulation.
    out_bf16 = jax.block_until_ready(
        patch_embed_forward(x, params, PATCH, compute_dtype=jnp.bfloat16))
    assert out_bf16.shape == (B, num_patches, EMBED), out_bf16.shape
    assert jnp.allclose(out_bf16, ref, rtol=1e-1, atol=1e-1), \
        float(jnp.max(jnp.abs(out_bf16 - ref)))

    # use_resnet_stem=False path (single patchify conv), f32 check.
    w_s = 0.1 * jax.random.normal(jax.random.PRNGKey(2), (EMBED, C, PATCH, PATCH),
                                  jnp.float32)
    b_s = 0.1 * jax.random.normal(jax.random.PRNGKey(3), (EMBED,), jnp.float32)
    out_s = jax.block_until_ready(
        patch_embed_forward_simple(x, w_s, b_s, PATCH, compute_dtype=jnp.float32))
    ref_s = jax.block_until_ready(patch_embed_simple_reference(x, w_s, b_s, PATCH))
    assert out_s.shape == (B, num_patches, EMBED), out_s.shape
    assert jnp.allclose(out_s, ref_s, rtol=1e-3, atol=1e-3), \
        float(jnp.max(jnp.abs(out_s - ref_s)))

    print("KERNEL_OK")
</pallas_src>

<mosaic_0001>
module attributes {stable_mosaic.version = 11 : i64} {
  func.func @_stem_kernel(%arg0: i32, %arg1: memref<1x64x27xf32, #tpu.memory_space<vmem>>, %arg2: memref<27x16xf32, #tpu.memory_space<vmem>>, %arg3: memref<1x16xf32, #tpu.memory_space<vmem>>, %arg4: memref<9x16x16xf32, #tpu.memory_space<vmem>>, %arg5: memref<1x16xf32, #tpu.memory_space<vmem>>, %arg6: memref<1x64x16xf32, #tpu.memory_space<vmem>>, %arg7: memref<96x16xf32, #tpu.memory_space<vmem>>) attributes {dimension_semantics = [#tpu.dimension_semantics<parallel>], iteration_bounds = array<i64: 2>, scalar_prefetch = 0 : i64, scratch_operands = 1 : i64, tpu.core_type = #tpu.core_type<tc>, window_params = [{transform_indices = @transform_0, window_bounds = array<i64: 1, 64, 27>}, {pipeline_mode = #tpu.pipeline_mode<synchronous>, transform_indices = @transform_1, window_bounds = array<i64: 27, 16>}, {pipeline_mode = #tpu.pipeline_mode<synchronous>, transform_indices = @transform_2, window_bounds = array<i64: 1, 16>}, {pipeline_mode = #tpu.pipeline_mode<synchronous>, transform_indices = @transform_3, window_bounds = array<i64: 9, 16, 16>}, {pipeline_mode = #tpu.pipeline_mode<synchronous>, transform_indices = @transform_4, window_bounds = array<i64: 1, 16>}, {transform_indices = @transform_5, window_bounds = array<i64: 1, 64, 16>}]} {
    %c0 = arith.constant 0 : index
    %c0_0 = arith.constant 0 : index
    %c0_1 = arith.constant 0 : index
    %0 = vector.load %arg1[%c0, %c0_0, %c0_1] : memref<1x64x27xf32, #tpu.memory_space<vmem>>, vector<1x64x27xf32>
    %1 = vector.shape_cast %0 : vector<1x64x27xf32> to vector<64x27xf32>
    %c0_2 = arith.constant 0 : index
    %c0_3 = arith.constant 0 : index
    %2 = vector.load %arg2[%c0_2, %c0_3] : memref<27x16xf32, #tpu.memory_space<vmem>>, vector<27x16xf32>
    %cst = arith.constant dense<0.000000e+00> : vector<64x16xf32>
    %3 = tpu.matmul %1, %2, %cst {dimension_numbers = #tpu.dot_dimension_numbers<[1], [0], [0], [1], [0, 0, 1, 1], [], []>} : vector<64x27xf32>, vector<27x16xf32>, vector<64x16xf32> -> vector<64x16xf32>
    %c0_4 = arith.constant 0 : index
    %c0_5 = arith.constant 0 : index
    %4 = vector.load %arg3[%c0_4, %c0_5] : memref<1x16xf32, #tpu.memory_space<vmem>>, vector<1x16xf32>
    %5 = vector.broadcast %4 : vector<1x16xf32> to vector<64x16xf32>
    %6 = arith.addf %3, %5 : vector<64x16xf32>
    %cst_6 = arith.constant 0.000000e+00 : f32
    %7 = vector.broadcast %cst_6 : f32 to vector<64x16xf32>
    %8 = arith.maximumf %6, %7 : vector<64x16xf32>
    %cst_7 = arith.constant 0.000000e+00 : f32
    %9 = vector.broadcast %cst_7 : f32 to vector<16x16xf32>
    %c0_8 = arith.constant 0 : index
    %c0_9 = arith.constant 0 : index
    %10 = vector.load %arg7[%c0_8, %c0_9] : memref<96x16xf32, #tpu.memory_space<vmem>>, vector<16x16xf32>
    tpu.vector_store %arg7[%c0_8, %c0_9], %9 {strides = array<i32>} : memref<96x16xf32, #tpu.memory_space<vmem>>, vector<16x16xf32>,
    %cst_10 = arith.constant 0.000000e+00 : f32
    %11 = vector.broadcast %cst_10 : f32 to vector<16x16xf32>
    %c80 = arith.constant 80 : index
    %c0_11 = arith.constant 0 : index
    %12 = vector.load %arg7[%c80, %c0_11] : memref<96x16xf32, #tpu.memory_space<vmem>>, vector<16x16xf32>
    tpu.vector_store %arg7[%c80, %c0_11], %11 {strides = array<i32>} : memref<96x16xf32, #tpu.memory_space<vmem>>, vector<16x16xf32>,
    %c16 = arith.constant 16 : index
    %c0_12 = arith.constant 0 : index
    %13 = vector.load %arg7[%c16, %c0_12] : memref<96x16xf32, #tpu.memory_space<vmem>>, vector<64x16xf32>
    tpu.vector_store %arg7[%c16, %c0_12], %8 {strides = array<i32>} : memref<96x16xf32, #tpu.memory_space<vmem>>, vector<64x16xf32>,
    %14 = tpu.iota {dimensions = array<i32: 0>} : vector<64x1xi32>
    %c8_i32 = arith.constant 8 : i32
    %c0_i32 = arith.constant 0 : i32
    %15 = arith.cmpi eq, %c8_i32, %c0_i32 : i32
    %c1_i32 = arith.constant 1 : i32
    %16 = arith.select %15, %c1_i32, %c8_i32 : i32
    %17 = vector.broadcast %16 : i32 to vector<64x1xi32>
    %18 = arith.remsi %14, %17 : vector<64x1xi32>
    %c0_i32_13 = arith.constant 0 : i32
    %19 = vector.broadcast %c0_i32_13 : i32 to vector<64x1xi32>
    %20 = arith.cmpi ne, %18, %19 : vector<64x1xi32>
    %c0_i32_14 = arith.constant 0 : i32
    %21 = vector.broadcast %c0_i32_14 : i32 to vector<64x1xi32>
    %22 = arith.cmpi slt, %18, %21 : vector<64x1xi32>
    %c0_i32_15 = arith.constant 0 : i32
    %23 = arith.cmpi slt, %16, %c0_i32_15 : i32
    %24 = vector.broadcast %23 : i1 to vector<64x1xi1>
    %25 = vector.broadcast %24 : vector<64x1xi1> to vector<64x1xi1>
    %26 = arith.xori %22, %25 : vector<64x1xi1>
    %27 = arith.andi %26, %20 : vector<64x1xi1>
    %28 = vector.broadcast %16 : i32 to vector<64x1xi32>
    %29 = arith.addi %18, %28 : vector<64x1xi32>
    %30 = arith.select %27, %29, %18 : vector<64x1xi1>, vector<64x1xi32>
    %cst_16 = arith.constant 0.000000e+00 : f32
    %31 = vector.broadcast %cst_16 : f32 to vector<64x16xf32>
    %c7 = arith.constant 7 : index
    %c0_17 = arith.constant 0 : index
    %32 = vector.load %arg7[%c7, %c0_17] : memref<96x16xf32, #tpu.memory_space<vmem>>, vector<64x16xf32>
    %c1_i32_18 = arith.constant 1 : i32
    %33 = vector.broadcast %c1_i32_18 : i32 to vector<64x1xi32>
    %34 = arith.cmpi sge, %30, %33 : vector<64x1xi32>
    %cst_19 = arith.constant 0.000000e+00 : f32
    %35 = vector.broadcast %cst_19 : f32 to vector<64x16xf32>
    %36 = vector.shape_cast %34 : vector<64x1xi1> to vector<64x1xi1>
    %37 = vector.broadcast %36 : vector<64x1xi1> to vector<64x16xi1>
    %38 = arith.select %37, %32, %35 : vector<64x16xi1>, vector<64x16xf32>
    %c0_20 = arith.constant 0 : index
    %c0_21 = arith.constant 0 : index
    %c0_22 = arith.constant 0 : index
    %39 = vector.load %arg4[%c0_20, %c0_21, %c0_22] : memref<9x16x16xf32, #tpu.memory_space<vmem>>, vector<1x16x16xf32>
    %40 = vector.shape_cast %39 : vector<1x16x16xf32> to vector<16x16xf32>
    %cst_23 = arith.constant dense<0.000000e+00> : vector<64x16xf32>
    %41 = tpu.matmul %38, %40, %cst_23 {dimension_numbers = #tpu.dot_dimension_numbers<[1], [0], [0], [1], [0, 0, 1, 1], [], []>} : vector<64x16xf32>, vector<16x16xf32>, vector<64x16xf32> -> vector<64x16xf32>
    %42 = arith.addf %31, %41 : vector<64x16xf32>
    %c8 = arith.constant 8 : index
    %c0_24 = arith.constant 0 : index
    %43 = vector.load %arg7[%c8, %c0_24] : memref<96x16xf32, #tpu.memory_space<vmem>>, vector<64x16xf32>
    %c1 = arith.constant 1 : index
    %c0_25 = arith.constant 0 : index
    %c0_26 = arith.constant 0 : index
    %44 = vector.load %arg4[%c1, %c0_25, %c0_26] : memref<9x16x16xf32, #tpu.memory_space<vmem>>, vector<1x16x16xf32>
    %45 = vector.shape_cast %44 : vector<1x16x16xf32> to vector<16x16xf32>
    %cst_27 = arith.constant dense<0.000000e+00> : vector<64x16xf32>
    %46 = tpu.matmul %43, %45, %cst_27 {dimension_numbers = #tpu.dot_dimension_numbers<[1], [0], [0], [1], [0, 0, 1, 1], [], []>} : vector<64x16xf32>, vector<16x16xf32>, vector<64x16xf32> -> vector<64x16xf32>
    %47 = arith.addf %42, %46 : vector<64x16xf32>
    %c9 = arith.constant 9 : index
    %c0_28 = arith.constant 0 : index
    %48 = vector.load %arg7[%c9, %c0_28] : memref<96x16xf32, #tpu.memory_space<vmem>>, vector<64x16xf32>
    %c6_i32 = arith.constant 6 : i32
    %49 = vector.broadcast %c6_i32 : i32 to vector<64x1xi32>
    %50 = arith.cmpi sle, %30, %49 : vector<64x1xi32>
    %cst_29 = arith.constant 0.000000e+00 : f32
    %51 = vector.broadcast %cst_29 : f32 to vector<64x16xf32>
    %52 = vector.shape_cast %50 : vector<64x1xi1> to vector<64x1xi1>
    %53 = vector.broadcast %52 : vector<64x1xi1> to vector<64x16xi1>
    %54 = arith.select %53, %48, %51 : vector<64x16xi1>, vector<64x16xf32>
    %c2 = arith.constant 2 : index
    %c0_30 = arith.constant 0 : index
    %c0_31 = arith.constant 0 : index
    %55 = vector.load %arg4[%c2, %c0_30, %c0_31] : memref<9x16x16xf32, #tpu.memory_space<vmem>>, vector<1x16x16xf32>
    %56 = vector.shape_cast %55 : vector<1x16x16xf32> to vector<16x16xf32>
    %cst_32 = arith.constant dense<0.000000e+00> : vector<64x16xf32>
    %57 = tpu.matmul %54, %56, %cst_32 {dimension_numbers = #tpu.dot_dimension_numbers<[1], [0], [0], [1], [0, 0, 1, 1], [], []>} : vector<64x16xf32>, vector<16x16xf32>, vector<64x16xf32> -> vector<64x16xf32>
    %58 = arith.addf %47, %57 : vector<64x16xf32>
    %c15 = arith.constant 15 : index
    %c0_33 = arith.constant 0 : index
    %59 = vector.load %arg7[%c15, %c0_33] : memref<96x16xf32, #tpu.memory_space<vmem>>, vector<64x16xf32>
    %c1_i32_34 = arith.constant 1 : i32
    %60 = vector.broadcast %c1_i32_34 : i32 to vector<64x1xi32>
    %61 = arith.cmpi sge, %30, %60 : vector<64x1xi32>
    %cst_35 = arith.constant 0.000000e+00 : f32
    %62 = vector.broadcast %cst_35 : f32 to vector<64x16xf32>
    %63 = vector.shape_cast %61 : vector<64x1xi1> to vector<64x1xi1>
    %64 = vector.broadcast %63 : vector<64x1xi1> to vector<64x16xi1>
    %65 = arith.select %64, %59, %62 : vector<64x16xi1>, vector<64x16xf32>
    %c3 = arith.constant 3 : index
    %c0_36 = arith.constant 0 : index
    %c0_37 = arith.constant 0 : index
    %66 = vector.load %arg4[%c3, %c0_36, %c0_37] : memref<9x16x16xf32, #tpu.memory_space<vmem>>, vector<1x16x16xf32>
    %67 = vector.shape_cast %66 : vector<1x16x16xf32> to vector<16x16xf32>
    %cst_38 = arith.constant dense<0.000000e+00> : vector<64x16xf32>
    %68 = tpu.matmul %65, %67, %cst_38 {dimension_numbers = #tpu.dot_dimension_numbers<[1], [0], [0], [1], [0, 0, 1, 1], [], []>} : vector<64x16xf32>, vector<16x16xf32>, vector<64x16xf32> -> vector<64x16xf32>
    %69 = arith.addf %58, %68 : vector<64x16xf32>
    %c16_39 = arith.constant 16 : index
    %c0_40 = arith.constant 0 : index
    %70 = vector.load %arg7[%c16_39, %c0_40] : memref<96x16xf32, #tpu.memory_space<vmem>>, vector<64x16xf32>
    %c4 = arith.constant 4 : index
    %c0_41 = arith.constant 0 : index
    %c0_42 = arith.constant 0 : index
    %71 = vector.load %arg4[%c4, %c0_41, %c0_42] : memref<9x16x16xf32, #tpu.memory_space<vmem>>, vector<1x16x16xf32>
    %72 = vector.shape_cast %71 : vector<1x16x16xf32> to vector<16x16xf32>
    %cst_43 = arith.constant dense<0.000000e+00> : vector<64x16xf32>
    %73 = tpu.matmul %70, %72, %cst_43 {dimension_numbers = #tpu.dot_dimension_numbers<[1], [0], [0], [1], [0, 0, 1, 1], [], []>} : vector<64x16xf32>, vector<16x16xf32>, vector<64x16xf32> -> vector<64x16xf32>
    %74 = arith.addf %69, %73 : vector<64x16xf32>
    %c17 = arith.constant 17 : index
    %c0_44 = arith.constant 0 : index
    %75 = vector.load %arg7[%c17, %c0_44] : memref<96x16xf32, #tpu.memory_space<vmem>>, vector<64x16xf32>
    %c6_i32_45 = arith.constant 6 : i32
    %76 = vector.broadcast %c6_i32_45 : i32 to vector<64x1xi32>
    %77 = arith.cmpi sle, %30, %76 : vector<64x1xi32>
    %cst_46 = arith.constant 0.000000e+00 : f32
    %78 = vector.broadcast %cst_46 : f32 to vector<64x16xf32>
    %79 = vector.shape_cast %77 : vector<64x1xi1> to vector<64x1xi1>
    %80 = vector.broadcast %79 : vector<64x1xi1> to vector<64x16xi1>
    %81 = arith.select %80, %75, %78 : vector<64x16xi1>, vector<64x16xf32>
    %c5 = arith.constant 5 : index
    %c0_47 = arith.constant 0 : index
    %c0_48 = arith.constant 0 : index
    %82 = vector.load %arg4[%c5, %c0_47, %c0_48] : memref<9x16x16xf32, #tpu.memory_space<vmem>>, vector<1x16x16xf32>
    %83 = vector.shape_cast %82 : vector<1x16x16xf32> to vector<16x16xf32>
    %cst_49 = arith.constant dense<0.000000e+00> : vector<64x16xf32>
    %84 = tpu.matmul %81, %83, %cst_49 {dimension_numbers = #tpu.dot_dimension_numbers<[1], [0], [0], [1], [0, 0, 1, 1], [], []>} : vector<64x16xf32>, vector<16x16xf32>, vector<64x16xf32> -> vector<64x16xf32>
    %85 = arith.addf %74, %84 : vector<64x16xf32>
    %c23 = arith.constant 23 : index
    %c0_50 = arith.constant 0 : index
    %86 = vector.load %arg7[%c23, %c0_50] : memref<96x16xf32, #tpu.memory_space<vmem>>, vector<64x16xf32>
    %c1_i32_51 = arith.constant 1 : i32
    %87 = vector.broadcast %c1_i32_51 : i32 to vector<64x1xi32>
    %88 = arith.cmpi sge, %30, %87 : vector<64x1xi32>
    %cst_52 = arith.constant 0.000000e+00 : f32
    %89 = vector.broadcast %cst_52 : f32 to vector<64x16xf32>
    %90 = vector.shape_cast %88 : vector<64x1xi1> to vector<64x1xi1>
    %91 = vector.broadcast %90 : vector<64x1xi1> to vector<64x16xi1>
    %92 = arith.select %91, %86, %89 : vector<64x16xi1>, vector<64x16xf32>
    %c6 = arith.constant 6 : index
    %c0_53 = arith.constant 0 : index
    %c0_54 = arith.constant 0 : index
    %93 = vector.load %arg4[%c6, %c0_53, %c0_54] : memref<9x16x16xf32, #tpu.memory_space<vmem>>, vector<1x16x16xf32>
    %94 = vector.shape_cast %93 : vector<1x16x16xf32> to vector<16x16xf32>
    %cst_55 = arith.constant dense<0.000000e+00> : vector<64x16xf32>
    %95 = tpu.matmul %92, %94, %cst_55 {dimension_numbers = #tpu.dot_dimension_numbers<[1], [0], [0], [1], [0, 0, 1, 1], [], []>} : vector<64x16xf32>, vector<16x16xf32>, vector<64x16xf32> -> vector<64x16xf32>
    %96 = arith.addf %85, %95 : vector<64x16xf32>
    %c24 = arith.constant 24 : index
    %c0_56 = arith.constant 0 : index
    %97 = vector.load %arg7[%c24, %c0_56] : memref<96x16xf32, #tpu.memory_space<vmem>>, vector<64x16xf32>
    %c7_57 = arith.constant 7 : index
    %c0_58 = arith.constant 0 : index
    %c0_59 = arith.constant 0 : index
    %98 = vector.load %arg4[%c7_57, %c0_58, %c0_59] : memref<9x16x16xf32, #tpu.memory_space<vmem>>, vector<1x16x16xf32>
    %99 = vector.shape_cast %98 : vector<1x16x16xf32> to vector<16x16xf32>
    %cst_60 = arith.constant dense<0.000000e+00> : vector<64x16xf32>
    %100 = tpu.matmul %97, %99, %cst_60 {dimension_numbers = #tpu.dot_dimension_numbers<[1], [0], [0], [1], [0, 0, 1, 1], [], []>} : vector<64x16xf32>, vector<16x16xf32>, vector<64x16xf32> -> vector<64x16xf32>
    %101 = arith.addf %96, %100 : vector<64x16xf32>
    %c25 = arith.constant 25 : index
    %c0_61 = arith.constant 0 : index
    %102 = vector.load %arg7[%c25, %c0_61] : memref<96x16xf32, #tpu.memory_space<vmem>>, vector<64x16xf32>
    %c6_i32_62 = arith.constant 6 : i32
    %103 = vector.broadcast %c6_i32_62 : i32 to vector<64x1xi32>
    %104 = arith.cmpi sle, %30, %103 : vector<64x1xi32>
    %cst_63 = arith.constant 0.000000e+00 : f32
    %105 = vector.broadcast %cst_63 : f32 to vector<64x16xf32>
    %106 = vector.shape_cast %104 : vector<64x1xi1> to vector<64x1xi1>
    %107 = vector.broadcast %106 : vector<64x1xi1> to vector<64x16xi1>
    %108 = arith.select %107, %102, %105 : vector<64x16xi1>, vector<64x16xf32>
    %c8_64 = arith.constant 8 : index
    %c0_65 = arith.constant 0 : index
    %c0_66 = arith.constant 0 : index
    %109 = vector.load %arg4[%c8_64, %c0_65, %c0_66] : memref<9x16x16xf32, #tpu.memory_space<vmem>>, vector<1x16x16xf32>
    %110 = vector.shape_cast %109 : vector<1x16x16xf32> to vector<16x16xf32>
    %cst_67 = arith.constant dense<0.000000e+00> : vector<64x16xf32>
    %111 = tpu.matmul %108, %110, %cst_67 {dimension_numbers = #tpu.dot_dimension_numbers<[1], [0], [0], [1], [0, 0, 1, 1], [], []>} : vector<64x16xf32>, vector<16x16xf32>, vector<64x16xf32> -> vector<64x16xf32>
    %112 = arith.addf %101, %111 : vector<64x16xf32>
    %c0_68 = arith.constant 0 : index
    %c0_69 = arith.constant 0 : index
    %113 = vector.load %arg5[%c0_68, %c0_69] : memref<1x16xf32, #tpu.memory_space<vmem>>, vector<1x16xf32>
    %114 = vector.broadcast %113 : vector<1x16xf32> to vector<64x16xf32>
    %115 = arith.addf %112, %114 : vector<64x16xf32>
    %cst_70 = arith.constant 0.000000e+00 : f32
    %116 = vector.broadcast %cst_70 : f32 to vector<64x16xf32>
    %117 = arith.maximumf %115, %116 : vector<64x16xf32>
    %c0_71 = arith.constant 0 : index
    %c0_72 = arith.constant 0 : index
    %c0_73 = arith.constant 0 : index
    %118 = vector.load %arg6[%c0_71, %c0_72, %c0_73] : memref<1x64x16xf32, #tpu.memory_space<vmem>>, vector<1x64x16xf32>
    %119 = vector.shape_cast %118 : vector<1x64x16xf32> to vector<64x16xf32>
    %120 = vector.shape_cast %117 : vector<64x16xf32> to vector<1x64x16xf32>
    tpu.vector_store %arg6[%c0_71, %c0_72, %c0_73], %120 {strides = array<i32>} : memref<1x64x16xf32, #tpu.memory_space<vmem>>, vector<1x64x16xf32>,
    return
  }
  func.func @transform_0(%arg0: i32) -> (i32, i32, i32) {
    %c0_i32 = arith.constant 0 : i32
    %c0_i32_0 = arith.constant 0 : i32
    %c0_i32_1 = arith.constant 0 : i32
    return %arg0, %c0_i32, %c0_i32_0 : i32, i32, i32
  }
  func.func @transform_1(%arg0: i32) -> (i32, i32) {
    %c0_i32 = arith.constant 0 : i32
    %c0_i32_0 = arith.constant 0 : i32
    %c0_i32_1 = arith.constant 0 : i32
    return %c0_i32, %c0_i32_0 : i32, i32
  }
  func.func @transform_2(%arg0: i32) -> (i32, i32) {
    %c0_i32 = arith.constant 0 : i32
    %c0_i32_0 = arith.constant 0 : i32
    %c0_i32_1 = arith.constant 0 : i32
    return %c0_i32, %c0_i32_0 : i32, i32
  }
  func.func @transform_3(%arg0: i32) -> (i32, i32, i32) {
    %c0_i32 = arith.constant 0 : i32
    %c0_i32_0 = arith.constant 0 : i32
    %c0_i32_1 = arith.constant 0 : i32
    %c0_i32_2 = arith.constant 0 : i32
    return %c0_i32, %c0_i32_0, %c0_i32_1 : i32, i32, i32
  }
  func.func @transform_4(%arg0: i32) -> (i32, i32) {
    %c0_i32 = arith.constant 0 : i32
    %c0_i32_0 = arith.constant 0 : i32
    %c0_i32_1 = arith.constant 0 : i32
    return %c0_i32, %c0_i32_0 : i32, i32
  }
  func.func @transform_5(%arg0: i32) -> (i32, i32, i32) {
    %c0_i32 = arith.constant 0 : i32
    %c0_i32_0 = arith.constant 0 : i32
    %c0_i32_1 = arith.constant 0 : i32
    return %arg0, %c0_i32, %c0_i32_0 : i32, i32, i32
  }
}

</mosaic_0001>

<llo_original>
// kernel: tpu_custom_call.1
$region0: #{tpu_custom_call.1}
  #allocation0 [shape = 'u32[]', space=smem, size = 0x4, offset = 0x4, fixed_abs, tag = 'smem constant byte address 0x4 - core index']
  #allocation1 [shape = 'u32[144,128]{1,0:T(1,128)}', space=vmem, size = 0x12000, scoped, tag = 'internal scratch']
  #allocation2 [shape = 'f32[96,16]{1,0:T(8,128)}', space=vmem, size = 0xc000, scoped, tag = 'scratch operand']
  %s0 = inlined_call_operand.vmem [shape: f32[2,64,27], index: 0, kind: input, shape index: {}]
  %s1 = inlined_call_operand.vmem [shape: f32[27,16], index: 1, kind: input, shape index: {}]
  %s2 = inlined_call_operand.vmem [shape: f32[1,16], index: 2, kind: input, shape index: {}]
  %s3 = inlined_call_operand.vmem [shape: f32[9,16,16], index: 3, kind: input, shape index: {}]
  %s4 = inlined_call_operand.vmem [shape: f32[1,16], index: 4, kind: input, shape index: {}]
  %s5 = inlined_call_operand.vmem [shape: f32[2,64,16], index: 5, kind: output, shape index: {}]
  %s6 = sld [smem:[#allocation0]]
  $region53: #{tpu_custom_call.1} parent=0
    _
  %s8 = ssub.s32 1, %s6
  %s9 = scalar_select 0, %s8, %s6
  loop: start=0, step=1, limit=4
  $region2: #{tpu_custom_call.1} parent=0 // loop_pre_header
    _
  $region3: #{tpu_custom_call.1} parent=0 // loop_header
    %s11 = sphi 0, %s15
    %p12 = scmp.ge.s32.totalorder %s11, 4
    %s21 = sphi 0, %s23
    %s24 = sphi 0, %s21
    %s25 = sphi 0, %s24
    %s41 = sphi 0, %s25
    %s45 = sphi 0, %s45
    %s47 = sphi 0, %s45
    %s48 = sphi 0, %s47
    %s62 = sphi 0, %s48
    %s66 = sphi 0, %s66
    %s68 = sphi 0, %s66
    %s69 = sphi 0, %s68
    %s83 = sphi 0, %s69
    %s87 = sphi 0, %s87
    %s89 = sphi 0, %s87
    %s90 = sphi 0, %s89
    %s104 = sphi 0, %s90
    %s108 = sphi 0, %s108
    %s110 = sphi 0, %s108
    %s111 = sphi 0, %s110
    %s125 = sphi 0, %s111
    %s131 = sphi 0, %s133
    %s134 = sphi 0, %s131
    %s135 = sphi 0, %s134
    %s151 = sphi 0, %s135
  $region4: #{tpu_custom_call.1} parent=0 // loop_header_branch
    %14 = sbr.rel (%p12) target = $region8
  $region5: #{tpu_custom_call.1} parent=0 // loop_body
    %s16 = ssub.s32 %s11, 1
    %s17 = ssub.s32 %s11, 2
    %s18 = sadd.s32 %s11, 1
    %s19 = ssub.s32 %s11, %s18
    %p20 = scmp.eq.s32.totalorder %s19, 0
    %s22 = sadd.s32 %s21, 1
    %s23 = scalar_select %p20, %s21, %s22
    %p26 = pneg %p20
    %p27 = scmp.eq.s32.totalorder %s11, 1
    %p28 = por %p26, %p27
    %p29 = scmp.ne.s32.totalorder %s21, %s24
    %p30 = scmp.eq.s32.totalorder %s11, 0
    %p31 = por %p29, %p30
    %p32 = scmp.ne.s32.totalorder %s21, %s24
    %p33 = scmp.eq.s32.totalorder %s16, 1
    %p34 = por %p32, %p33
    %p35 = scmp.ne.s32.totalorder %s24, %s25
    %p36 = scmp.eq.s32.totalorder %s16, 0
    %p37 = por %p35, %p36
    %p38 = scmp.ne.s32.totalorder %s24, %s25
    %p39 = scmp.eq.s32.totalorder %s17, 1
    %p40 = por %p38, %p39
    %p42 = scmp.ne.s32.totalorder %s25, %s41
    %p43 = scmp.eq.s32.totalorder %s17, 0
    %p44 = por %p42, %p43
    %s46 = sadd.s32 %s45, 1
    %p49 = scmp.eq.s32.totalorder %s11, 1
    %p50 = scmp.ne.s32.totalorder %s45, %s47
    %p51 = scmp.eq.s32.totalorder %s11, 0
    %p52 = por %p50, %p51
    %p53 = scmp.ne.s32.totalorder %s45, %s47
    %p54 = scmp.eq.s32.totalorder %s16, 1
    %p55 = por %p53, %p54
    %p56 = scmp.ne.s32.totalorder %s47, %s48
    %p57 = scmp.eq.s32.totalorder %s16, 0
    %p58 = por %p56, %p57
    %p59 = scmp.ne.s32.totalorder %s47, %s48
    %p60 = scmp.eq.s32.totalorder %s17, 1
    %p61 = por %p59, %p60
    %p63 = scmp.ne.s32.totalorder %s48, %s62
    %p64 = scmp.eq.s32.totalorder %s17, 0
    %p65 = por %p63, %p64
    %s67 = sadd.s32 %s66, 1
    %p70 = scmp.eq.s32.totalorder %s11, 1
    %p71 = scmp.ne.s32.totalorder %s66, %s68
    %p72 = scmp.eq.s32.totalorder %s11, 0
    %p73 = por %p71, %p72
    %p74 = scmp.ne.s32.totalorder %s66, %s68
    %p75 = scmp.eq.s32.totalorder %s16, 1
    %p76 = por %p74, %p75
    %p77 = scmp.ne.s32.totalorder %s68, %s69
    %p78 = scmp.eq.s32.totalorder %s16, 0
    %p79 = por %p77, %p78
    %p80 = scmp.ne.s32.totalorder %s68, %s69
    %p81 = scmp.eq.s32.totalorder %s17, 1
    %p82 = por %p80, %p81
    %p84 = scmp.ne.s32.totalorder %s69, %s83
    %p85 = scmp.eq.s32.totalorder %s17, 0
    %p86 = por %p84, %p85
    %s88 = sadd.s32 %s87, 1
    %p91 = scmp.eq.s32.totalorder %s11, 1
    %p92 = scmp.ne.s32.totalorder %s87, %s89
    %p93 = scmp.eq.s32.totalorder %s11, 0
    %p94 = por %p92, %p93
    %p95 = scmp.ne.s32.totalorder %s87, %s89
    %p96 = scmp.eq.s32.totalorder %s16, 1
    %p97 = por %p95, %p96
    %p98 = scmp.ne.s32.totalorder %s89, %s90
    %p99 = scmp.eq.s32.totalorder %s16, 0
    %p100 = por %p98, %p99
    %p101 = scmp.ne.s32.totalorder %s89, %s90
    %p102 = scmp.eq.s32.totalorder %s17, 1
    %p103 = por %p101, %p102
    %p105 = scmp.ne.s32.totalorder %s90, %s104
    %p106 = scmp.eq.s32.totalorder %s17, 0
    %p107 = por %p105, %p106
    %s109 = sadd.s32 %s108, 1
    %p112 = scmp.eq.s32.totalorder %s11, 1
    %p113 = scmp.ne.s32.totalorder %s108, %s110
    %p114 = scmp.eq.s32.totalorder %s11, 0
    %p115 = por %p113, %p114
    %p116 = scmp.ne.s32.totalorder %s108, %s110
    %p117 = scmp.eq.s32.totalorder %s16, 1
    %p118 = por %p116, %p117
    %p119 = scmp.ne.s32.totalorder %s110, %s111
    %p120 = scmp.eq.s32.totalorder %s16, 0
    %p121 = por %p119, %p120
    %p122 = scmp.ne.s32.totalorder %s110, %s111
    %p123 = scmp.eq.s32.totalorder %s17, 1
    %p124 = por %p122, %p123
    %p126 = scmp.ne.s32.totalorder %s111, %s125
    %p127 = scmp.eq.s32.totalorder %s17, 0
    %p128 = por %p126, %p127
    %s129 = ssub.s32 %s11, %s18
    %p130 = scmp.eq.s32.totalorder %s129, 0
    %s132 = sadd.s32 %s131, 1
    %s133 = scalar_select %p130, %s131, %s132
    %p136 = pneg %p130
    %p137 = scmp.eq.s32.totalorder %s11, 1
    %p138 = por %p136, %p137
    %p139 = scmp.ne.s32.totalorder %s131, %s134
    %p140 = scmp.eq.s32.totalorder %s11, 0
    %p141 = por %p139, %p140
    %p142 = scmp.ne.s32.totalorder %s131, %s134
    %p143 = scmp.eq.s32.totalorder %s16, 1
    %p144 = por %p142, %p143
    %p145 = scmp.ne.s32.totalorder %s134, %s135
    %p146 = scmp.eq.s32.totalorder %s16, 0
    %p147 = por %p145, %p146
    %p148 = scmp.ne.s32.totalorder %s134, %s135
    %p149 = scmp.eq.s32.totalorder %s17, 1
    %p150 = por %p148, %p149
    %p152 = scmp.ne.s32.totalorder %s135, %s151
    %p153 = scmp.eq.s32.totalorder %s17, 0
    %p154 = por %p152, %p153
    %p155 = scmp.le.s32.totalorder 1, %s11
    %p156 = scmp.lt.s32.totalorder %s11, 3
    %p157 = pnand %p155, %p156
    %p158 = pneg %p157
    // Predicated region
    $region9: #{tpu_custom_call.1} parent=5 // pred_check
      _
    $region10: #{tpu_custom_call.1} parent=5 // pred_check_branch
      %160 = sbr.rel (%p157) target = $region12
    $region11: #{tpu_custom_call.1} parent=5 // pred_region
      %s161 = ssub.s32 %s11, 1
      // Predicated region
      $region13: #{tpu_custom_call.1} parent=11 // pred_check
        %p162 = pneg %p58
      $region14: #{tpu_custom_call.1} parent=11 // pred_check_branch
        %164 = sbr.rel (%p162) target = $region16
      $region15: #{tpu_custom_call.1} parent=11 // pred_region
        _
      $region16: #{tpu_custom_call.1} parent=11 // pred_fallthru
        _
      // Predicated region
      $region17: #{tpu_custom_call.1} parent=11 // pred_check
        %p165 = pneg %p79
      $region18: #{tpu_custom_call.1} parent=11 // pred_check_branch
        %167 = sbr.rel (%p165) target = $region20
      $region19: #{tpu_custom_call.1} parent=11 // pred_region
        _
      $region20: #{tpu_custom_call.1} parent=11 // pred_fallthru
        _
      // Predicated region
      $region21: #{tpu_custom_call.1} parent=11 // pred_check
        %p168 = pneg %p100
      $region22: #{tpu_custom_call.1} parent=11 // pred_check_branch
        %170 = sbr.rel (%p168) target = $region24
      $region23: #{tpu_custom_call.1} parent=11 // pred_region
        _
      $region24: #{tpu_custom_call.1} parent=11 // pred_fallthru
        _
      // Predicated region
      $region25: #{tpu_custom_call.1} parent=11 // pred_check
        %p171 = pneg %p121
      $region26: #{tpu_custom_call.1} parent=11 // pred_check_branch
        %173 = sbr.rel (%p171) target = $region28
      $region27: #{tpu_custom_call.1} parent=11 // pred_region
        _
      $region28: #{tpu_custom_call.1} parent=11 // pred_fallthru
        _
    $region12: #{tpu_custom_call.1} parent=5 // pred_fallthru
      _
    %p174 = scmp.lt.s32.totalorder %s11, 2
    // Predicated region
    $region29: #{tpu_custom_call.1} parent=5 // pred_check
      %p175 = pneg %p174
    $region30: #{tpu_custom_call.1} parent=5 // pred_check_branch
      %177 = sbr.rel (%p175) target = $region32
    $region31: #{tpu_custom_call.1} parent=5 // pred_region
      // Predicated region
      $region33: #{tpu_custom_call.1} parent=31 // pred_check
        %p178 = pneg %p31
      $region34: #{tpu_custom_call.1} parent=31 // pred_check_branch
        %180 = sbr.rel (%p178) target = $region36
      $region35: #{tpu_custom_call.1} parent=31 // pred_region
        %p181 = scmp.lt.s32.totalorder %s11, 1
        %s182 = scalar_select %p181, %s11, 1
        %s183 = smul.addr %s182, 8
        %s184 = smul.addr %s183, 8
        %s185 = scalar_lea.vmem %s0, %s184
      $region36: #{tpu_custom_call.1} parent=31 // pred_fallthru
        _
    $region32: #{tpu_custom_call.1} parent=5 // pred_fallthru
      _
    %p186 = scmp.le.s32.totalorder 1, %s11
    %p187 = scmp.lt.s32.totalorder %s11, 3
    %p188 = pnand %p186, %p187
    %p189 = pneg %p188
    // Predicated region
    $region37: #{tpu_custom_call.1} parent=5 // pred_check
      _
    $region38: #{tpu_custom_call.1} parent=5 // pred_check_branch
      %191 = sbr.rel (%p188) target = $region40
    $region39: #{tpu_custom_call.1} parent=5 // pred_region
      %s192 = ssub.s32 %s11, 1
      %p193 = scmp.lt.s32.totalorder %s16, 1
      %s194 = scalar_select %p193, %s16, 1
      %s195 = smul.addr %s194, 8
      %s196 = smul.addr %s195, 8
      %s197 = scalar_lea.vmem %s0, %s196
      %p198 = pneg %p37
      %p199 = pneg %p34
      %p200 = pneg %p58
      %p201 = pneg %p55
      %p202 = pneg %p79
      %p203 = pneg %p76
      %p204 = pneg %p100
      %p205 = pneg %p97
      %p206 = pneg %p121
      %p207 = pneg %p118
      %p208 = pneg %p147
      %p209 = pneg %p144
      %p210 = scmp.lt.s32.totalorder %s16, 1
      %s211 = scalar_select %p210, %s16, 1
      %s212 = smul.addr %s211, 8
      %s213 = smul.addr %s212, 8
      %s214 = scalar_lea.vmem %s5, %s213
      %p215 = scmp.lt.s32.totalorder %s16, 1
      %s216 = scalar_select %p215, %s16, 1
      %s217 = smul.addr %s216, 8
      %s218 = smul.addr %s217, 8
      %s219 = scalar_lea.vmem %s0, %s218
      %p220 = scmp.lt.s32.totalorder %s16, 1
      %s221 = scalar_select %p220, %s16, 1
      %s222 = smul.addr %s221, 8
      %s223 = smul.addr %s222, 8
      %s224 = scalar_lea.vmem %s5, %s223
      %v225 = vld [vmem:[%s219] sm:$0xff]
      %v226 = vld [vmem:[%s219 + $0x8] sm:$0xff]
      %v227 = vld [vmem:[%s219 + $0x10] sm:$0xff]
      %v228 = vld [vmem:[%s219 + $0x18] sm:$0xff]
      %v229 = vld [vmem:[%s219 + $0x20] sm:$0xff]
      %v230 = vld [vmem:[%s219 + $0x28] sm:$0xff]
      %v231 = vld [vmem:[%s219 + $0x30] sm:$0xff]
      %v232 = vld [vmem:[%s219 + $0x38] sm:$0xff]
      %v233 = vld [vmem:[%s1] sm:$0xff]
      %v234 = vld [vmem:[%s1 + $0x8] sm:$0xff]
      %v235 = vld [vmem:[%s1 + $0x10] sm:$0xff]
      %v236 = vld [vmem:[%s1 + $0x18] sm:$0x7]
      %v237 = vld [vmem:[%s2] sm:$0x1]
      %v239 = vlaneseq
      %v240 = vshrl.u32 %v239, 7
      %v241 = vsub.s32 0, %v240
      %v242 = vrot.slane %v237, %v241
      %vm244 = vcmask 220160
      %v246 = vsel %vm244, %v225, 0
      %v249 = vsel %vm244, %v226, 0
      %v252 = vsel %vm244, %v227, 0
      %v255 = vsel %vm244, %v228, 0
      %v258 = vsel %vm244, %v229, 0
      %v261 = vsel %vm244, %v230, 0
      %v264 = vsel %vm244, %v231, 0
      %v267 = vsel %vm244, %v232, 0
      %vm269 = vcmask 1042432
      %v271 = vsel %vm269, %v236, 0
      %273 = vmatprep.subr.mxu0 0.0
      %274 = vmatpush1.msra.mxu0 %v233
      %275 = vmatprep.subr.mxu0 0.0
      %276 = vmatpush1.msra.mxu0 %v234
      %277 = vmatprep.subr.mxu0 0.0
      %278 = vmatpush1.msra.mxu0 %v235
      %279 = vmatprep.subr.mxu0 0.0
      %280 = vmatpush1.msra.mxu0 %v271
      %281 = vmatprep.subr.mxu0 0.0
      %282 = vmatpush1.msra.mxu0 0.0
      %283 = vmatprep.subr.mxu0 0.0
      %284 = vmatpush1.msra.mxu0 0.0
      %285 = vmatprep.subr.mxu0 0.0
      %286 = vmatpush1.msra.mxu0 0.0
      %287 = vmatprep.subr.mxu0 0.0
      %288 = vmatpush1.msra.mxu0 0.0
      %289 = vmatprep.subr.mxu0 0.0
      %290 = vmatpush1.msra.mxu0 0.0
      %291 = vmatprep.subr.mxu0 0.0
      %292 = vmatpush1.msra.mxu0 0.0
      %293 = vmatprep.subr.mxu0 0.0
      %294 = vmatpush1.msra.mxu0 0.0
      %295 = vmatprep.subr.mxu0 0.0
      %296 = vmatpush1.msra.mxu0 0.0
      %297 = vmatprep.subr.mxu0 0.0
      %298 = vmatpush1.msra.mxu0 0.0
      %299 = vmatprep.subr.mxu0 0.0
      %300 = vmatpush1.msra.mxu0 0.0
      %301 = vmatprep.subr.mxu0 0.0
      %302 = vmatpush1.msra.mxu0 0.0
      %303 = vmatprep.subr.mxu0 0.0
      %304 = vmatpush1.msra.mxu0 0.0
      %305 = vmatprep.subr.mxu0 0.0
      %306 = vmatpush1.msra.mxu0 0.0
      %307 = vmatprep.subr.mxu0 0.0
      %308 = vmatpush1.msra.mxu0 0.0
      %309 = vmatprep.subr.mxu0 0.0
      %310 = vmatpush1.msra.mxu0 0.0
      %311 = vmatprep.subr.mxu0 0.0
      %312 = vmatpush1.msra.mxu0 0.0
      %313 = vmatprep.subr.mxu0 0.0
      %314 = vmatpush1.msra.mxu0 0.0
      %315 = vmatprep.subr.mxu0 0.0
      %316 = vmatpush1.msra.mxu0 0.0
      %317 = vmatprep.subr.mxu0 0.0
      %318 = vmatpush1.msra.mxu0 0.0
      %319 = vmatprep.subr.mxu0 0.0
      %320 = vmatpush1.msra.mxu0 0.0
      %321 = vmatprep.subr.mxu0 0.0
      %322 = vmatpush1.msra.mxu0 0.0
      %323 = vmatprep.subr.mxu0 0.0
      %324 = vmatpush1.msra.mxu0 0.0
      %325 = vmatprep.subr.mxu0 0.0
      %326 = vmatpush1.msra.mxu0 0.0
      %327 = vmatprep.subr.mxu0 0.0
      %328 = vmatpush1.msra.mxu0 0.0
      %329 = vmatprep.subr.mxu0 0.0
      %330 = vmatpush1.msra.mxu0 0.0
      %331 = vmatprep.subr.mxu0 0.0
      %332 = vmatpush1.msra.mxu0 0.0
      %333 = vmatprep.subr.mxu0 0.0
      %334 = vmatpush1.msra.mxu0 0.0
      %335 = vmatprep.subr.mxu0 0.0
      %336 = vmatpush1.msra.mxu0 0.0
      %337 = vmatprep.mubr.f32.mxu0 0.0
      %338 = vmatmul.mubr.f32.gmra.mrb[0].mxu0 %v246
      %v339 = vpop.f32.mrb[0].mxu0
      %v340 = vadd.f32 %v242, %v339
      %v341 = vpop.f32.mrb[0].mxu0
      %342 = vmatprep.mubr.f32.mxu0 0.0
      %343 = vmatmul.mubr.f32.gmra.mrb[0].mxu0 %v249
      %v344 = vpop.f32.mrb[0].mxu0
      %v345 = vadd.f32 %v242, %v344
      %v346 = vpop.f32.mrb[0].mxu0
      %347 = vmatprep.mubr.f32.mxu0 0.0
      %348 = vmatmul.mubr.f32.gmra.mrb[0].mxu0 %v252
      %v349 = vpop.f32.mrb[0].mxu0
      %v350 = vadd.f32 %v242, %v349
      %v351 = vpop.f32.mrb[0].mxu0
      %352 = vmatprep.mubr.f32.mxu0 0.0
      %353 = vmatmul.mubr.f32.gmra.mrb[0].mxu0 %v255
      %v354 = vpop.f32.mrb[0].mxu0
      %v355 = vadd.f32 %v242, %v354
      %v356 = vpop.f32.mrb[0].mxu0
      %357 = vmatprep.mubr.f32.mxu0 0.0
      %358 = vmatmul.mubr.f32.gmra.mrb[0].mxu0 %v258
      %v359 = vpop.f32.mrb[0].mxu0
      %v360 = vadd.f32 %v242, %v359
      %v361 = vpop.f32.mrb[0].mxu0
      %362 = vmatprep.mubr.f32.mxu0 0.0
      %363 = vmatmul.mubr.f32.gmra.mrb[0].mxu0 %v261
      %v364 = vpop.f32.mrb[0].mxu0
      %v365 = vadd.f32 %v242, %v364
      %v366 = vpop.f32.mrb[0].mxu0
      %367 = vmatprep.mubr.f32.mxu0 0.0
      %368 = vmatmul.mubr.f32.gmra.mrb[0].mxu0 %v264
      %v369 = vpop.f32.mrb[0].mxu0
      %v370 = vadd.f32 %v242, %v369
      %v371 = vpop.f32.mrb[0].mxu0
      %372 = vmatprep.mubr.f32.mxu0 0.0
      %373 = vmatmul.mubr.f32.gmra.mrb[0].mxu0 %v267
      %v374 = vpop.f32.mrb[0].mxu0
      %v375 = vadd.f32 %v242, %v374
      %v376 = vpop.f32.mrb[0].mxu0
      %377 = vdwg.mxu0
      %v378 = vmax.f32 %v340, 0.0
      %v379 = vmax.f32 %v345, 0.0
      %v380 = vmax.f32 %v350, 0.0
      %v381 = vmax.f32 %v355, 0.0
      %v382 = vmax.f32 %v360, 0.0
      %v383 = vmax.f32 %v365, 0.0
      %v384 = vmax.f32 %v370, 0.0
      %v385 = vmax.f32 %v375, 0.0
      %vm386 = vcmask 130048
      %387 = vst.msk [vmem:[#allocation2] sm:$0xff] %vm386, 0.0
      %388 = vst.msk [vmem:[#allocation2 + $0x8] sm:$0xff] %vm386, 0.0
      %389 = vst.msk [vmem:[#allocation2 + $0x50] sm:$0xff] %vm386, 0.0
      %390 = vst.msk [vmem:[#allocation2 + $0x58] sm:$0xff] %vm386, 0.0
      %391 = vst.msk [vmem:[#allocation2 + $0x10] sm:$0xff] %vm386, %v378
      %392 = vst.msk [vmem:[#allocation2 + $0x18] sm:$0xff] %vm386, %v379
      %393 = vst.msk [vmem:[#allocation2 + $0x20] sm:$0xff] %vm386, %v380
      %394 = vst.msk [vmem:[#allocation2 + $0x28] sm:$0xff] %vm386, %v381
      %395 = vst.msk [vmem:[#allocation2 + $0x30] sm:$0xff] %vm386, %v382
      %396 = vst.msk [vmem:[#allocation2 + $0x38] sm:$0xff] %vm386, %v383
      %397 = vst.msk [vmem:[#allocation2 + $0x40] sm:$0xff] %vm386, %v384
      %398 = vst.msk [vmem:[#allocation2 + $0x48] sm:$0xff] %vm386, %v385
      %v399 = vlaneseq
      %v400 = vshrl.u32 %v399, 7
      %v401 = vadd.s32 %v400, 8
      %v402 = vadd.s32 %v400, 16
      %v403 = vadd.s32 %v400, 24
      %v404 = vadd.s32 %v400, 32
      %v405 = vadd.s32 %v400, 40
      %v406 = vadd.s32 %v400, 48
      %v407 = vadd.s32 %v400, 56
      %vm408 = vcmp.lt.s32.totalorder %v400, 0
      %v409 = vsub.s32 0, %v400
      %v410 = vsel %vm408, %v409, %v400
      %v411 = vshrl.u32 %v410, 3
      %v412 = vand.u32 %v410, 7
      %v413 = vsub.s32 0, %v412
      %v414 = vsel %vm408, %v413, %v412
      %vm415 = vcmp.lt.s32.totalorder %v401, 0
      %v416 = vsub.s32 0, %v401
      %v417 = vsel %vm415, %v416, %v401
      %v418 = vshrl.u32 %v417, 3
      %v419 = vand.u32 %v417, 7
      %v420 = vsub.s32 0, %v419
      %v421 = vsel %vm415, %v420, %v419
      %vm422 = vcmp.lt.s32.totalorder %v402, 0
      %v423 = vsub.s32 0, %v402
      %v424 = vsel %vm422, %v423, %v402
      %v425 = vshrl.u32 %v424, 3
      %v426 = vand.u32 %v424, 7
      %v427 = vsub.s32 0, %v426
      %v428 = vsel %vm422, %v427, %v426
      %vm429 = vcmp.lt.s32.totalorder %v403, 0
      %v430 = vsub.s32 0, %v403
      %v431 = vsel %vm429, %v430, %v403
      %v432 = vshrl.u32 %v431, 3
      %v433 = vand.u32 %v431, 7
      %v434 = vsub.s32 0, %v433
      %v435 = vsel %vm429, %v434, %v433
      %vm436 = vcmp.lt.s32.totalorder %v404, 0
      %v437 = vsub.s32 0, %v404
      %v438 = vsel %vm436, %v437, %v404
      %v439 = vshrl.u32 %v438, 3
      %v440 = vand.u32 %v438, 7
      %v441 = vsub.s32 0, %v440
      %v442 = vsel %vm436, %v441, %v440
      %vm443 = vcmp.lt.s32.totalorder %v405, 0
      %v444 = vsub.s32 0, %v405
      %v445 = vsel %vm443, %v444, %v405
      %v446 = vshrl.u32 %v445, 3
      %v447 = vand.u32 %v445, 7
      %v448 = vsub.s32 0, %v447
      %v449 = vsel %vm443, %v448, %v447
      %vm450 = vcmp.lt.s32.totalorder %v406, 0
      %v451 = vsub.s32 0, %v406
      %v452 = vsel %vm450, %v451, %v406
      %v453 = vshrl.u32 %v452, 3
      %v454 = vand.u32 %v452, 7
      %v455 = vsub.s32 0, %v454
      %v456 = vsel %vm450, %v455, %v454
      %vm457 = vcmp.lt.s32.totalorder %v407, 0
      %v458 = vsub.s32 0, %v407
      %v459 = vsel %vm457, %v458, %v407
      %v460 = vshrl.u32 %v459, 3
      %v461 = vand.u32 %v459, 7
      %v462 = vsub.s32 0, %v461
      %v463 = vsel %vm457, %v462, %v461
      %vm464 = vcmp.ne.s32.totalorder %v414, 0
      %vm465 = vcmp.ne.s32.totalorder %v421, 0
      %vm466 = vcmp.ne.s32.totalorder %v428, 0
      %vm467 = vcmp.ne.s32.totalorder %v435, 0
      %vm468 = vcmp.ne.s32.totalorder %v442, 0
      %vm469 = vcmp.ne.s32.totalorder %v449, 0
      %vm470 = vcmp.ne.s32.totalorder %v456, 0
      %vm471 = vcmp.ne.s32.totalorder %v463, 0
      %vm472 = vcmp.lt.s32.totalorder %v414, 0
      %vm473 = vcmp.lt.s32.totalorder %v421, 0
      %vm474 = vcmp.lt.s32.totalorder %v428, 0
      %vm475 = vcmp.lt.s32.totalorder %v435, 0
      %vm476 = vcmp.lt.s32.totalorder %v442, 0
      %vm477 = vcmp.lt.s32.totalorder %v449, 0
      %vm478 = vcmp.lt.s32.totalorder %v456, 0
      %vm479 = vcmp.lt.s32.totalorder %v463, 0
      %vm480 = vmand %vm472, %vm464
      %vm481 = vmand %vm473, %vm465
      %vm482 = vmand %vm474, %vm466
      %vm483 = vmand %vm475, %vm467
      %vm484 = vmand %vm476, %vm468
      %vm485 = vmand %vm477, %vm469
      %vm486 = vmand %vm478, %vm470
      %vm487 = vmand %vm479, %vm471
      %v488 = vadd.s32 %v414, 8
      %v489 = vadd.s32 %v421, 8
      %v490 = vadd.s32 %v428, 8
      %v491 = vadd.s32 %v435, 8
      %v492 = vadd.s32 %v442, 8
      %v493 = vadd.s32 %v449, 8
      %v494 = vadd.s32 %v456, 8
      %v495 = vadd.s32 %v463, 8
      %v496 = vsel %vm480, %v488, %v414
      %v497 = vsel %vm481, %v489, %v421
      %v498 = vsel %vm482, %v490, %v428
      %v499 = vsel %vm483, %v491, %v435
      %v500 = vsel %vm484, %v492, %v442
      %v501 = vsel %vm485, %v493, %v449
      %v502 = vsel %vm486, %v494, %v456
      %v503 = vsel %vm487, %v495, %v463
      %v504 = vld [vmem:[#allocation2 + $0x7] sm:$0xff]
      %v505 = vld [vmem:[#allocation2 + $0xf] sm:$0xff]
      %v506 = vld [vmem:[#allocation2 + $0x17] sm:$0xff]
      %v507 = vld [vmem:[#allocation2 + $0x1f] sm:$0xff]
      %v508 = vld [vmem:[#allocation2 + $0x27] sm:$0xff]
      %v509 = vld [vmem:[#allocation2 + $0x2f] sm:$0xff]
      %v510 = vld [vmem:[#allocation2 + $0x37] sm:$0xff]
      %v511 = vld [vmem:[#allocation2 + $0x3f] sm:$0xff]
      %vm512 = vcmp.ge.s32.totalorder %v496, 1
      %vm513 = vcmp.ge.s32.totalorder %v497, 1
      %vm514 = vcmp.ge.s32.totalorder %v498, 1
      %vm515 = vcmp.ge.s32.totalorder %v499, 1
      %vm516 = vcmp.ge.s32.totalorder %v500, 1
      %vm517 = vcmp.ge.s32.totalorder %v501, 1
      %vm518 = vcmp.ge.s32.totalorder %v502, 1
      %vm519 = vcmp.ge.s32.totalorder %v503, 1
      %v520 = vsel %vm512, 1, 0
      %v521 = vsel %vm513, 1, 0
      %v522 = vsel %vm514, 1, 0
      %v523 = vsel %vm515, 1, 0
      %v524 = vsel %vm516, 1, 0
      %v525 = vsel %vm517, 1, 0
      %v526 = vsel %vm518, 1, 0
      %v527 = vsel %vm519, 1, 0
      %vm528 = vcmp.eq.s32.totalorder %v520, 1
      %vm529 = vcmp.eq.s32.totalorder %v521, 1
      %vm530 = vcmp.eq.s32.totalorder %v522, 1
      %vm531 = vcmp.eq.s32.totalorder %v523, 1
      %vm532 = vcmp.eq.s32.totalorder %v524, 1
      %vm533 = vcmp.eq.s32.totalorder %v525, 1
      %vm534 = vcmp.eq.s32.totalorder %v526, 1
      %vm535 = vcmp.eq.s32.totalorder %v527, 1
      %v536 = vsel %vm528, %v504, 0.0
      %v537 = vsel %vm529, %v505, 0.0
      %v538 = vsel %vm530, %v506, 0.0
      %v539 = vsel %vm531, %v507, 0.0
      %v540 = vsel %vm532, %v508, 0.0
      %v541 = vsel %vm533, %v509, 0.0
      %v542 = vsel %vm534, %v510, 0.0
      %v543 = vsel %vm535, %v511, 0.0
      %v544 = vld [vmem:[%s3] sm:$0xff]
      %v545 = vld [vmem:[%s3 + $0x8] sm:$0xff]
      %v546 = vld [vmem:[#allocation2 + $0x8] sm:$0xff]
      %v547 = vld [vmem:[#allocation2 + $0x10] sm:$0xff]
      %v548 = vld [vmem:[#allocation2 + $0x18] sm:$0xff]
      %v549 = vld [vmem:[#allocation2 + $0x20] sm:$0xff]
      %v550 = vld [vmem:[#allocation2 + $0x28] sm:$0xff]
      %v551 = vld [vmem:[#allocation2 + $0x30] sm:$0xff]
      %v552 = vld [vmem:[#allocation2 + $0x38] sm:$0xff]
      %v553 = vld [vmem:[#allocation2 + $0x40] sm:$0xff]
      %s554 = scalar_lea.vmem %s3, 16
      %v555 = vld [vmem:[%s554] sm:$0xff]
      %v556 = vld [vmem:[%s554 + $0x8] sm:$0xff]
      %v558 = vsel %vm386, %v546, 0
      %v561 = vsel %vm386, %v547, 0
      %v564 = vsel %vm386, %v548, 0
      %v567 = vsel %vm386, %v549, 0
      %v570 = vsel %vm386, %v550, 0
      %v573 = vsel %vm386, %v551, 0
      %v576 = vsel %vm386, %v552, 0
      %v579 = vsel %vm386, %v553, 0
      %581 = vmatprep.subr.mxu0 0.0
      %582 = vmatpush1.msra.mxu0 %v555
      %583 = vmatprep.subr.mxu0 0.0
      %584 = vmatpush1.msra.mxu0 %v556
      %585 = vmatprep.subr.mxu0 0.0
      %586 = vmatpush1.msra.mxu0 0.0
      %587 = vmatprep.subr.mxu0 0.0
      %588 = vmatpush1.msra.mxu0 0.0
      %589 = vmatprep.subr.mxu0 0.0
      %590 = vmatpush1.msra.mxu0 0.0
      %591 = vmatprep.subr.mxu0 0.0
      %592 = vmatpush1.msra.mxu0 0.0
      %593 = vmatprep.subr.mxu0 0.0
      %594 = vmatpush1.msra.mxu0 0.0
      %595 = vmatprep.subr.mxu0 0.0
      %596 = vmatpush1.msra.mxu0 0.0
      %597 = vmatprep.subr.mxu0 0.0
      %598 = vmatpush1.msra.mxu0 0.0
      %599 = vmatprep.subr.mxu0 0.0
      %600 = vmatpush1.msra.mxu0 0.0
      %601 = vmatprep.subr.mxu0 0.0
      %602 = vmatpush1.msra.mxu0 0.0
      %603 = vmatprep.subr.mxu0 0.0
      %604 = vmatpush1.msra.mxu0 0.0
      %605 = vmatprep.subr.mxu0 0.0
      %606 = vmatpush1.msra.mxu0 0.0
      %607 = vmatprep.subr.mxu0 0.0
      %608 = vmatpush1.msra.mxu0 0.0
      %609 = vmatprep.subr.mxu0 0.0
      %610 = vmatpush1.msra.mxu0 0.0
      %611 = vmatprep.subr.mxu0 0.0
      %612 = vmatpush1.msra.mxu0 0.0
      %613 = vmatprep.subr.mxu0 0.0
      %614 = vmatpush1.msra.mxu0 0.0
      %615 = vmatprep.subr.mxu0 0.0
      %616 = vmatpush1.msra.mxu0 0.0
      %617 = vmatprep.subr.mxu0 0.0
      %618 = vmatpush1.msra.mxu0 0.0
      %619 = vmatprep.subr.mxu0 0.0
      %620 = vmatpush1.msra.mxu0 0.0
      %621 = vmatprep.subr.mxu0 0.0
      %622 = vmatpush1.msra.mxu0 0.0
      %623 = vmatprep.subr.mxu0 0.0
      %624 = vmatpush1.msra.mxu0 0.0
      %625 = vmatprep.subr.mxu0 0.0
      %626 = vmatpush1.msra.mxu0 0.0
      %627 = vmatprep.subr.mxu0 0.0
      %628 = vmatpush1.msra.mxu0 0.0
      %629 = vmatprep.subr.mxu0 0.0
      %630 = vmatpush1.msra.mxu0 0.0
      %631 = vmatprep.subr.mxu0 0.0
      %632 = vmatpush1.msra.mxu0 0.0
      %633 = vmatprep.subr.mxu0 0.0
      %634 = vmatpush1.msra.mxu0 0.0
      %635 = vmatprep.subr.mxu0 0.0
      %636 = vmatpush1.msra.mxu0 0.0
      %637 = vmatprep.subr.mxu0 0.0
      %638 = vmatpush1.msra.mxu0 0.0
      %639 = vmatprep.subr.mxu0 0.0
      %640 = vmatpush1.msra.mxu0 0.0
      %641 = vmatprep.subr.mxu0 0.0
      %642 = vmatpush1.msra.mxu0 0.0
      %643 = vmatprep.subr.mxu0 0.0
      %644 = vmatpush1.msra.mxu0 0.0
      %645 = vmatprep.mubr.f32.mxu0 0.0
      %646 = vmatmul.mubr.f32.gmra.mrb[0].mxu0 %v558
      %v647 = vpop.f32.mrb[0].mxu0
      %v648 = vadd.f32 0.0, %v647
      %v649 = vpop.f32.mrb[0].mxu0
      %650 = vmatprep.mubr.f32.mxu0 0.0
      %651 = vmatmul.mubr.f32.gmra.mrb[0].mxu0 %v561
      %v652 = vpop.f32.mrb[0].mxu0
      %v653 = vadd.f32 0.0, %v652
      %v654 = vpop.f32.mrb[0].mxu0
      %655 = vmatprep.mubr.f32.mxu0 0.0
      %656 = vmatmul.mubr.f32.gmra.mrb[0].mxu0 %v564
      %v657 = vpop.f32.mrb[0].mxu0
      %v658 = vadd.f32 0.0, %v657
      %v659 = vpop.f32.mrb[0].mxu0
      %660 = vmatprep.mubr.f32.mxu0 0.0
      %661 = vmatmul.mubr.f32.gmra.mrb[0].mxu0 %v567
      %v662 = vpop.f32.mrb[0].mxu0
      %v663 = vadd.f32 0.0, %v662
      %v664 = vpop.f32.mrb[0].mxu0
      %665 = vmatprep.mubr.f32.mxu0 0.0
      %666 = vmatmul.mubr.f32.gmra.mrb[0].mxu0 %v570
      %v667 = vpop.f32.mrb[0].mxu0
      %v668 = vadd.f32 0.0, %v667
      %v669 = vpop.f32.mrb[0].mxu0
      %670 = vmatprep.mubr.f32.mxu0 0.0
      %671 = vmatmul.mubr.f32.gmra.mrb[0].mxu0 %v573
      %v672 = vpop.f32.mrb[0].mxu0
      %v673 = vadd.f32 0.0, %v672
      %v674 = vpop.f32.mrb[0].mxu0
      %675 = vmatprep.mubr.f32.mxu0 0.0
      %676 = vmatmul.mubr.f32.gmra.mrb[0].mxu0 %v576
      %v677 = vpop.f32.mrb[0].mxu0
      %v678 = vadd.f32 0.0, %v677
      %v679 = vpop.f32.mrb[0].mxu0
      %680 = vmatprep.mubr.f32.mxu0 0.0
      %681 = vmatmul.mubr.f32.gmra.mrb[0].mxu0 %v579
      %v682 = vpop.f32.mrb[0].mxu0
      %v683 = vadd.f32 0.0, %v682
      %v684 = vpop.f32.mrb[0].mxu0
      %685 = vdwg.mxu0
      %v687 = vsel %vm386, %v536, 0
      %v690 = vsel %vm386, %v537, 0
      %v693 = vsel %vm386, %v538, 0
      %v696 = vsel %vm386, %v539, 0
      %v699 = vsel %vm386, %v540, 0
      %v702 = vsel %vm386, %v541, 0
      %v705 = vsel %vm386, %v542, 0
      %v708 = vsel %vm386, %v543, 0
      %710 = vmatprep.subr.mxu0 0.0
      %711 = vmatpush1.msra.mxu0 %v544
      %712 = vmatprep.subr.mxu0 0.0
      %713 = vmatpush1.msra.mxu0 %v545
      %714 = vmatprep.subr.mxu0 0.0
      %715 = vmatpush1.msra.mxu0 0.0
      %716 = vmatprep.subr.mxu0 0.0
      %717 = vmatpush1.msra.mxu0 0.0
      %718 = vmatprep.subr.mxu0 0.0
      %719 = vmatpush1.msra.mxu0 0.0
      %720 = vmatprep.subr.mxu0 0.0
      %721 = vmatpush1.msra.mxu0 0.0
      %722 = vmatprep.subr.mxu0 0.0
      %723 = vmatpush1.msra.mxu0 0.0
      %724 = vmatprep.subr.mxu0 0.0
      %725 = vmatpush1.msra.mxu0 0.0
      %726 = vmatprep.subr.mxu0 0.0
      %727 = vmatpush1.msra.mxu0 0.0
      %728 = vmatprep.subr.mxu0 0.0
      %729 = vmatpush1.msra.mxu0 0.0
      %730 = vmatprep.subr.mxu0 0.0
      %731 = vmatpush1.msra.mxu0 0.0
      %732 = vmatprep.subr.mxu0 0.0
      %733 = vmatpush1.msra.mxu0 0.0
      %734 = vmatprep.subr.mxu0 0.0
      %735 = vmatpush1.msra.mxu0 0.0
      %736 = vmatprep.subr.mxu0 0.0
      %737 = vmatpush1.msra.mxu0 0.0
      %738 = vmatprep.subr.mxu0 0.0
      %739 = vmatpush1.msra.mxu0 0.0
      %740 = vmatprep.subr.mxu0 0.0
      %741 = vmatpush1.msra.mxu0 0.0
      %742 = vmatprep.subr.mxu0 0.0
      %743 = vmatpush1.msra.mxu0 0.0
      %744 = vmatprep.subr.mxu0 0.0
      %745 = vmatpush1.msra.mxu0 0.0
      %746 = vmatprep.subr.mxu0 0.0
      %747 = vmatpush1.msra.mxu0 0.0
      %748 = vmatprep.subr.mxu0 0.0
      %749 = vmatpush1.msra.mxu0 0.0
      %750 = vmatprep.subr.mxu0 0.0
      %751 = vmatpush1.msra.mxu0 0.0
      %752 = vmatprep.subr.mxu0 0.0
      %753 = vmatpush1.msra.mxu0 0.0
      %754 = vmatprep.subr.mxu0 0.0
      %755 = vmatpush1.msra.mxu0 0.0
      %756 = vmatprep.subr.mxu0 0.0
      %757 = vmatpush1.msra.mxu0 0.0
      %758 = vmatprep.subr.mxu0 0.0
      %759 = vmatpush1.msra.mxu0 0.0
      %760 = vmatprep.subr.mxu0 0.0
      %761 = vmatpush1.msra.mxu0 0.0
      %762 = vmatprep.subr.mxu0 0.0
      %763 = vmatpush1.msra.mxu0 0.0
      %764 = vmatprep.subr.mxu0 0.0
      %765 = vmatpush1.msra.mxu0 0.0
      %766 = vmatprep.subr.mxu0 0.0
      %767 = vmatpush1.msra.mxu0 0.0
      %768 = vmatprep.subr.mxu0 0.0
      %769 = vmatpush1.msra.mxu0 0.0
      %770 = vmatprep.subr.mxu0 0.0
      %771 = vmatpush1.msra.mxu0 0.0
      %772 = vmatprep.subr.mxu0 0.0
      %773 = vmatpush1.msra.mxu0 0.0
      %774 = vmatprep.mubr.f32.mxu0 0.0
      %775 = vmatmul.mubr.f32.gmra.mrb[0].mxu0 %v687
      %v776 = vpop.f32.mrb[0].mxu0
      %v777 = vadd.f32 %v648, %v776
      %v778 = vpop.f32.mrb[0].mxu0
      %779 = vmatprep.mubr.f32.mxu0 0.0
      %780 = vmatmul.mubr.f32.gmra.mrb[0].mxu0 %v690
      %v781 = vpop.f32.mrb[0].mxu0
      %v782 = vadd.f32 %v653, %v781
      %v783 = vpop.f32.mrb[0].mxu0
      %784 = vmatprep.mubr.f32.mxu0 0.0
      %785 = vmatmul.mubr.f32.gmra.mrb[0].mxu0 %v693
      %v786 = vpop.f32.mrb[0].mxu0
      %v787 = vadd.f32 %v658, %v786
      %v788 = vpop.f32.mrb[0].mxu0
      %789 = vmatprep.mubr.f32.mxu0 0.0
      %790 = vmatmul.mubr.f32.gmra.mrb[0].mxu0 %v696
      %v791 = vpop.f32.mrb[0].mxu0
      %v792 = vadd.f32 %v663, %v791
      %v793 = vpop.f32.mrb[0].mxu0
      %794 = vmatprep.mubr.f32.mxu0 0.0
      %795 = vmatmul.mubr.f32.gmra.mrb[0].mxu0 %v699
      %v796 = vpop.f32.mrb[0].mxu0
      %v797 = vadd.f32 %v668, %v796
      %v798 = vpop.f32.mrb[0].mxu0
      %799 = vmatprep.mubr.f32.mxu0 0.0
      %800 = vmatmul.mubr.f32.gmra.mrb[0].mxu0 %v702
      %v801 = vpop.f32.mrb[0].mxu0
      %v802 = vadd.f32 %v673, %v801
      %v803 = vpop.f32.mrb[0].mxu0
      %804 = vmatprep.mubr.f32.mxu0 0.0
      %805 = vmatmul.mubr.f32.gmra.mrb[0].mxu0 %v705
      %v806 = vpop.f32.mrb[0].mxu0
      %v807 = vadd.f32 %v678, %v806
      %v808 = vpop.f32.mrb[0].mxu0
      %809 = vmatprep.mubr.f32.mxu0 0.0
      %810 = vmatmul.mubr.f32.gmra.mrb[0].mxu0 %v708
      %v811 = vpop.f32.mrb[0].mxu0
      %v812 = vadd.f32 %v683, %v811
      %v813 = vpop.f32.mrb[0].mxu0
      %814 = vdwg.mxu0
      %v815 = vld [vmem:[#allocation2 + $0x9] sm:$0xff]
      %v816 = vld [vmem:[#allocation2 + $0x11] sm:$0xff]
      %v817 = vld [vmem:[#allocation2 + $0x19] sm:$0xff]
      %v818 = vld [vmem:[#allocation2 + $0x21] sm:$0xff]
      %v819 = vld [vmem:[#allocation2 + $0x29] sm:$0xff]
      %v820 = vld [vmem:[#allocation2 + $0x31] sm:$0xff]
      %v821 = vld [vmem:[#allocation2 + $0x39] sm:$0xff]
      %v822 = vld [vmem:[#allocation2 + $0x41] sm:$0xff]
      %vm823 = vcmp.le.s32.totalorder %v496, 6
      %vm824 = vcmp.le.s32.totalorder %v497, 6
      %vm825 = vcmp.le.s32.totalorder %v498, 6
      %vm826 = vcmp.le.s32.totalorder %v499, 6
      %vm827 = vcmp.le.s32.totalorder %v500, 6
      %vm828 = vcmp.le.s32.totalorder %v501, 6
      %vm829 = vcmp.le.s32.totalorder %v502, 6
      %vm830 = vcmp.le.s32.totalorder %v503, 6
      %v831 = vsel %vm823, 1, 0
      %v832 = vsel %vm824, 1, 0
      %v833 = vsel %vm825, 1, 0
      %v834 = vsel %vm826, 1, 0
      %v835 = vsel %vm827, 1, 0
      %v836 = vsel %vm828, 1, 0
      %v837 = vsel %vm829, 1, 0
      %v838 = vsel %vm830, 1, 0
      %vm839 = vcmp.eq.s32.totalorder %v831, 1
      %vm840 = vcmp.eq.s32.totalorder %v832, 1
      %vm841 = vcmp.eq.s32.totalorder %v833, 1
      %vm842 = vcmp.eq.s32.totalorder %v834, 1
      %vm843 = vcmp.eq.s32.totalorder %v835, 1
      %vm844 = vcmp.eq.s32.totalorder %v836, 1
      %vm845 = vcmp.eq.s32.totalorder %v837, 1
      %vm846 = vcmp.eq.s32.totalorder %v838, 1
      %v847 = vsel %vm839, %v815, 0.0
      %v848 = vsel %vm840, %v816, 0.0
      %v849 = vsel %vm841, %v817, 0.0
      %v850 = vsel %vm842, %v818, 0.0
      %v851 = vsel %vm843, %v819, 0.0
      %v852 = vsel %vm844, %v820, 0.0
      %v853 = vsel %vm845, %v821, 0.0
      %v854 = vsel %vm846, %v822, 0.0
      %s855 = scalar_lea.vmem %s3, 32
      %v856 = vld [vmem:[%s855] sm:$0xff]
      %v857 = vld [vmem:[%s855 + $0x8] sm:$0xff]
      %v859 = vsel %vm386, %v847, 0
      %v862 = vsel %vm386, %v848, 0
      %v865 = vsel %vm386, %v849, 0
      %v868 = vsel %vm386, %v850, 0
      %v871 = vsel %vm386, %v851, 0
      %v874 = vsel %vm386, %v852, 0
      %v877 = vsel %vm386, %v853, 0
      %v880 = vsel %vm386, %v854, 0
      %882 = vmatprep.subr.mxu0 0.0
      %883 = vmatpush1.msra.mxu0 %v856
      %884 = vmatprep.subr.mxu0 0.0
      %885 = vmatpush1.msra.mxu0 %v857
      %886 = vmatprep.subr.mxu0 0.0
      %887 = vmatpush1.msra.mxu0 0.0
      %888 = vmatprep.subr.mxu0 0.0
      %889 = vmatpush1.msra.mxu0 0.0
      %890 = vmatprep.subr.mxu0 0.0
      %891 = vmatpush1.msra.mxu0 0.0
      %892 = vmatprep.subr.mxu0 0.0
      %893 = vmatpush1.msra.mxu0 0.0
      %894 = vmatprep.subr.mxu0 0.0
      %895 = vmatpush1.msra.mxu0 0.0
      %896 = vmatprep.subr.mxu0 0.0
      %897 = vmatpush1.msra.mxu0 0.0
      %898 = vmatprep.subr.mxu0 0.0
      %899 = vmatpush1.msra.mxu0 0.0
      %900 = vmatprep.subr.mxu0 0.0
      %901 = vmatpush1.msra.mxu0 0.0
      %902 = vmatprep.subr.mxu0 0.0
      %903 = vmatpush1.msra.mxu0 0.0
      %904 = vmatprep.subr.mxu0 0.0
      %905 = vmatpush1.msra.mxu0 0.0
      %906 = vmatprep.subr.mxu0 0.0
      %907 = vmatpush1.msra.mxu0 0.0
      %908 = vmatprep.subr.mxu0 0.0
      %909 = vmatpush1.msra.mxu0 0.0
      %910 = vmatprep.subr.mxu0 0.0
      %911 = vmatpush1.msra.mxu0 0.0
      %912 = vmatprep.subr.mxu0 0.0
      %913 = vmatpush1.msra.mxu0 0.0
      %914 = vmatprep.subr.mxu0 0.0
      %915 = vmatpush1.msra.mxu0 0.0
      %916 = vmatprep.subr.mxu0 0.0
      %917 = vmatpush1.msra.mxu0 0.0
      %918 = vmatprep.subr.mxu0 0.0
      %919 = vmatpush1.msra.mxu0 0.0
      %920 = vmatprep.subr.mxu0 0.0
      %921 = vmatpush1.msra.mxu0 0.0
      %922 = vmatprep.subr.mxu0 0.0
      %923 = vmatpush1.msra.mxu0 0.0
      %924 = vmatprep.subr.mxu0 0.0
      %925 = vmatpush1.msra.mxu0 0.0
      %926 = vmatprep.subr.mxu0 0.0
      %927 = vmatpush1.msra.mxu0 0.0
      %928 = vmatprep.subr.mxu0 0.0
      %929 = vmatpush1.msra.mxu0 0.0
      %930 = vmatprep.subr.mxu0 0.0
      %931 = vmatpush1.msra.mxu0 0.0
      %932 = vmatprep.subr.mxu0 0.0
      %933 = vmatpush1.msra.mxu0 0.0
      %934 = vmatprep.subr.mxu0 0.0
      %935 = vmatpush1.msra.mxu0 0.0
      %936 = vmatprep.subr.mxu0 0.0
      %937 = vmatpush1.msra.mxu0 0.0
      %938 = vmatprep.subr.mxu0 0.0
      %939 = vmatpush1.msra.mxu0 0.0
      %940 = vmatprep.subr.mxu0 0.0
      %941 = vmatpush1.msra.mxu0 0.0
      %942 = vmatprep.subr.mxu0 0.0
      %943 = vmatpush1.msra.mxu0 0.0
      %944 = vmatprep.subr.mxu0 0.0
      %945 = vmatpush1.msra.mxu0 0.0
      %946 = vmatprep.mubr.f32.mxu0 0.0
      %947 = vmatmul.mubr.f32.gmra.mrb[0].mxu0 %v859
      %v948 = vpop.f32.mrb[0].mxu0
      %v949 = vadd.f32 0.0, %v948
      %v950 = vpop.f32.mrb[0].mxu0
      %951 = vmatprep.mubr.f32.mxu0 0.0
      %952 = vmatmul.mubr.f32.gmra.mrb[0].mxu0 %v862
      %v953 = vpop.f32.mrb[0].mxu0
      %v954 = vadd.f32 0.0, %v953
      %v955 = vpop.f32.mrb[0].mxu0
      %956 = vmatprep.mubr.f32.mxu0 0.0
      %957 = vmatmul.mubr.f32.gmra.mrb[0].mxu0 %v865
      %v958 = vpop.f32.mrb[0].mxu0
      %v959 = vadd.f32 0.0, %v958
      %v960 = vpop.f32.mrb[0].mxu0
      %961 = vmatprep.mubr.f32.mxu0 0.0
      %962 = vmatmul.mubr.f32.gmra.mrb[0].mxu0 %v868
      %v963 = vpop.f32.mrb[0].mxu0
      %v964 = vadd.f32 0.0, %v963
      %v965 = vpop.f32.mrb[0].mxu0
      %966 = vmatprep.mubr.f32.mxu0 0.0
      %967 = vmatmul.mubr.f32.gmra.mrb[0].mxu0 %v871
      %v968 = vpop.f32.mrb[0].mxu0
      %v969 = vadd.f32 0.0, %v968
      %v970 = vpop.f32.mrb[0].mxu0
      %971 = vmatprep.mubr.f32.mxu0 0.0
      %972 = vmatmul.mubr.f32.gmra.mrb[0].mxu0 %v874
      %v973 = vpop.f32.mrb[0].mxu0
      %v974 = vadd.f32 0.0, %v973
      %v975 = vpop.f32.mrb[0].mxu0
      %976 = vmatprep.mubr.f32.mxu0 0.0
      %977 = vmatmul.mubr.f32.gmra.mrb[0].mxu0 %v877
      %v978 = vpop.f32.mrb[0].mxu0
      %v979 = vadd.f32 0.0, %v978
      %v980 = vpop.f32.mrb[0].mxu0
      %981 = vmatprep.mubr.f32.mxu0 0.0
      %982 = vmatmul.mubr.f32.gmra.mrb[0].mxu0 %v880
      %v983 = vpop.f32.mrb[0].mxu0
      %v984 = vadd.f32 0.0, %v983
      %v985 = vpop.f32.mrb[0].mxu0
      %986 = vdwg.mxu0
      %v987 = vadd.f32 %v777, %v949
      %v988 = vadd.f32 %v782, %v954
      %v989 = vadd.f32 %v787, %v959
      %v990 = vadd.f32 %v792, %v964
      %v991 = vadd.f32 %v797, %v969
      %v992 = vadd.f32 %v802, %v974
      %v993 = vadd.f32 %v807, %v979
      %v994 = vadd.f32 %v812, %v984
      %v995 = vld [vmem:[#allocation2 + $0xf] sm:$0xff]
      %v996 = vld [vmem:[#allocation2 + $0x17] sm:$0xff]
      %v997 = vld [vmem:[#allocation2 + $0x1f] sm:$0xff]
      %v998 = vld [vmem:[#allocation2 + $0x27] sm:$0xff]
      %v999 = vld [vmem:[#allocation2 + $0x2f] sm:$0xff]
      %v1000 = vld [vmem:[#allocation2 + $0x37] sm:$0xff]
      %v1001 = vld [vmem:[#allocation2 + $0x3f] sm:$0xff]
      %v1002 = vld [vmem:[#allocation2 + $0x47] sm:$0xff]
      %v1003 = vsel %vm528, %v995, 0.0
      %v1004 = vsel %vm529, %v996, 0.0
      %v1005 = vsel %vm530, %v997, 0.0
      %v1006 = vsel %vm531, %v998, 0.0
      %v1007 = vsel %vm532, %v999, 0.0
      %v1008 = vsel %vm533, %v1000, 0.0
      %v1009 = vsel %vm534, %v1001, 0.0
      %v1010 = vsel %vm535, %v1002, 0.0
      %s1011 = scalar_lea.vmem %s3, 48
      %v1012 = vld [vmem:[%s1011] sm:$0xff]
      %v1013 = vld [vmem:[%s1011 + $0x8] sm:$0xff]
      %v1015 = vsel %vm386, %v1003, 0
      %v1018 = vsel %vm386, %v1004, 0
      %v1021 = vsel %vm386, %v1005, 0
      %v1024 = vsel %vm386, %v1006, 0
      %v1027 = vsel %vm386, %v1007, 0
      %v1030 = vsel %vm386, %v1008, 0
      %v1033 = vsel %vm386, %v1009, 0
      %v1036 = vsel %vm386, %v1010, 0
      %1038 = vmatprep.subr.mxu0 0.0
      %1039 = vmatpush1.msra.mxu0 %v1012
      %1040 = vmatprep.subr.mxu0 0.0
      %1041 = vmatpush1.msra.mxu0 %v1013
      %1042 = vmatprep.subr.mxu0 0.0
      %1043 = vmatpush1.msra.mxu0 0.0
      %1044 = vmatprep.subr.mxu0 0.0
      %1045 = vmatpush1.msra.mxu0 0.0
      %1046 = vmatprep.subr.mxu0 0.0
      %1047 = vmatpush1.msra.mxu0 0.0
      %1048 = vmatprep.subr.mxu0 0.0
      %1049 = vmatpush1.msra.mxu0 0.0
      %1050 = vmatprep.subr.mxu0 0.0
      %1051 = vmatpush1.msra.mxu0 0.0
      %1052 = vmatprep.subr.mxu0 0.0
      %1053 = vmatpush1.msra.mxu0 0.0
      %1054 = vmatprep.subr.mxu0 0.0
      %1055 = vmatpush1.msra.mxu0 0.0
      %1056 = vmatprep.subr.mxu0 0.0
      %1057 = vmatpush1.msra.mxu0 0.0
      %1058 = vmatprep.subr.mxu0 0.0
      %1059 = vmatpush1.msra.mxu0 0.0
      %1060 = vmatprep.subr.mxu0 0.0
      %1061 = vmatpush1.msra.mxu0 0.0
      %1062 = vmatprep.subr.mxu0 0.0
      %1063 = vmatpush1.msra.mxu0 0.0
      %1064 = vmatprep.subr.mxu0 0.0
      %1065 = vmatpush1.msra.mxu0 0.0
      %1066 = vmatprep.subr.mxu0 0.0
      %1067 = vmatpush1.msra.mxu0 0.0
      %1068 = vmatprep.subr.mxu0 0.0
      %1069 = vmatpush1.msra.mxu0 0.0
      %1070 = vmatprep.subr.mxu0 0.0
      %1071 = vmatpush1.msra.mxu0 0.0
      %1072 = vmatprep.subr.mxu0 0.0
      %1073 = vmatpush1.msra.mxu0 0.0
      %1074 = vmatprep.subr.mxu0 0.0
      %1075 = vmatpush1.msra.mxu0 0.0
      %1076 = vmatprep.subr.mxu0 0.0
      %1077 = vmatpush1.msra.mxu0 0.0
      %1078 = vmatprep.subr.mxu0 0.0
      %1079 = vmatpush1.msra.mxu0 0.0
      %1080 = vmatprep.subr.mxu0 0.0
      %1081 = vmatpush1.msra.mxu0 0.0
      %1082 = vmatprep.subr.mxu0 0.0
      %1083 = vmatpush1.msra.mxu0 0.0
      %1084 = vmatprep.subr.mxu0 0.0
      %1085 = vmatpush1.msra.mxu0 0.0
      %1086 = vmatprep.subr.mxu0 0.0
      %1087 = vmatpush1.msra.mxu0 0.0
      %1088 = vmatprep.subr.mxu0 0.0
      %1089 = vmatpush1.msra.mxu0 0.0
      %1090 = vmatprep.subr.mxu0 0.0
      %1091 = vmatpush1.msra.mxu0 0.0
      %1092 = vmatprep.subr.mxu0 0.0
      %1093 = vmatpush1.msra.mxu0 0.0
      %1094 = vmatprep.subr.mxu0 0.0
      %1095 = vmatpush1.msra.mxu0 0.0
      %1096 = vmatprep.subr.mxu0 0.0
      %1097 = vmatpush1.msra.mxu0 0.0
      %1098 = vmatprep.subr.mxu0 0.0
      %1099 = vmatpush1.msra.mxu0 0.0
      %1100 = vmatprep.subr.mxu0 0.0
      %1101 = vmatpush1.msra.mxu0 0.0
      %1102 = vmatprep.mubr.f32.mxu0 0.0
      %1103 = vmatmul.mubr.f32.gmra.mrb[0].mxu0 %v1015
      %v1104 = vpop.f32.mrb[0].mxu0
      %v1105 = vadd.f32 0.0, %v1104
      %v1106 = vpop.f32.mrb[0].mxu0
      %1107 = vmatprep.mubr.f32.mxu0 0.0
      %1108 = vmatmul.mubr.f32.gmra.mrb[0].mxu0 %v1018
      %v1109 = vpop.f32.mrb[0].mxu0
      %v1110 = vadd.f32 0.0, %v1109
      %v1111 = vpop.f32.mrb[0].mxu0
      %1112 = vmatprep.mubr.f32.mxu0 0.0
      %1113 = vmatmul.mubr.f32.gmra.mrb[0].mxu0 %v1021
      %v1114 = vpop.f32.mrb[0].mxu0
      %v1115 = vadd.f32 0.0, %v1114
      %v1116 = vpop.f32.mrb[0].mxu0
      %1117 = vmatprep.mubr.f32.mxu0 0.0
      %1118 = vmatmul.mubr.f32.gmra.mrb[0].mxu0 %v1024
      %v1119 = vpop.f32.mrb[0].mxu0
      %v1120 = vadd.f32 0.0, %v1119
      %v1121 = vpop.f32.mrb[0].mxu0
      %1122 = vmatprep.mubr.f32.mxu0 0.0
      %1123 = vmatmul.mubr.f32.gmra.mrb[0].mxu0 %v1027
      %v1124 = vpop.f32.mrb[0].mxu0
      %v1125 = vadd.f32 0.0, %v1124
      %v1126 = vpop.f32.mrb[0].mxu0
      %1127 = vmatprep.mubr.f32.mxu0 0.0
      %1128 = vmatmul.mubr.f32.gmra.mrb[0].mxu0 %v1030
      %v1129 = vpop.f32.mrb[0].mxu0
      %v1130 = vadd.f32 0.0, %v1129
      %v1131 = vpop.f32.mrb[0].mxu0
      %1132 = vmatprep.mubr.f32.mxu0 0.0
      %1133 = vmatmul.mubr.f32.gmra.mrb[0].mxu0 %v1033
      %v1134 = vpop.f32.mrb[0].mxu0
      %v1135 = vadd.f32 0.0, %v1134
      %v1136 = vpop.f32.mrb[0].mxu0
      %1137 = vmatprep.mubr.f32.mxu0 0.0
      %1138 = vmatmul.mubr.f32.gmra.mrb[0].mxu0 %v1036
      %v1139 = vpop.f32.mrb[0].mxu0
      %v1140 = vadd.f32 0.0, %v1139
      %v1141 = vpop.f32.mrb[0].mxu0
      %1142 = vdwg.mxu0
      %v1143 = vadd.f32 %v987, %v1105
      %v1144 = vadd.f32 %v988, %v1110
      %v1145 = vadd.f32 %v989, %v1115
      %v1146 = vadd.f32 %v990, %v1120
      %v1147 = vadd.f32 %v991, %v1125
      %v1148 = vadd.f32 %v992, %v1130
      %v1149 = vadd.f32 %v993, %v1135
      %v1150 = vadd.f32 %v994, %v1140
      %v1151 = vld [vmem:[#allocation2 + $0x10] sm:$0xff]
      %v1152 = vld [vmem:[#allocation2 + $0x18] sm:$0xff]
      %v1153 = vld [vmem:[#allocation2 + $0x20] sm:$0xff]
      %v1154 = vld [vmem:[#allocation2 + $0x28] sm:$0xff]
      %v1155 = vld [vmem:[#allocation2 + $0x30] sm:$0xff]
      %v1156 = vld [vmem:[#allocation2 + $0x38] sm:$0xff]
      %v1157 = vld [vmem:[#allocation2 + $0x40] sm:$0xff]
      %v1158 = vld [vmem:[#allocation2 + $0x48] sm:$0xff]
      %s1159 = scalar_lea.vmem %s3, 64
      %v1160 = vld [vmem:[%s1159] sm:$0xff]
      %v1161 = vld [vmem:[%s1159 + $0x8] sm:$0xff]
      %v1163 = vsel %vm386, %v1151, 0
      %v1166 = vsel %vm386, %v1152, 0
      %v1169 = vsel %vm386, %v1153, 0
      %v1172 = vsel %vm386, %v1154, 0
      %v1175 = vsel %vm386, %v1155, 0
      %v1178 = vsel %vm386, %v1156, 0
      %v1181 = vsel %vm386, %v1157, 0
      %v1184 = vsel %vm386, %v1158, 0
      %1186 = vmatprep.subr.mxu0 0.0
      %1187 = vmatpush1.msra.mxu0 %v1160
      %1188 = vmatprep.subr.mxu0 0.0
      %1189 = vmatpush1.msra.mxu0 %v1161
      %1190 = vmatprep.subr.mxu0 0.0
      %1191 = vmatpush1.msra.mxu0 0.0
      %1192 = vmatprep.subr.mxu0 0.0
      %1193 = vmatpush1.msra.mxu0 0.0
      %1194 = vmatprep.subr.mxu0 0.0
      %1195 = vmatpush1.msra.mxu0 0.0
      %1196 = vmatprep.subr.mxu0 0.0
      %1197 = vmatpush1.msra.mxu0 0.0
      %1198 = vmatprep.subr.mxu0 0.0
      %1199 = vmatpush1.msra.mxu0 0.0
      %1200 = vmatprep.subr.mxu0 0.0
      %1201 = vmatpush1.msra.mxu0 0.0
      %1202 = vmatprep.subr.mxu0 0.0
      %1203 = vmatpush1.msra.mxu0 0.0
      %1204 = vmatprep.subr.mxu0 0.0
      %1205 = vmatpush1.msra.mxu0 0.0
      %1206 = vmatprep.subr.mxu0 0.0
      %1207 = vmatpush1.msra.mxu0 0.0
      %1208 = vmatprep.subr.mxu0 0.0
      %1209 = vmatpush1.msra.mxu0 0.0
      %1210 = vmatprep.subr.mxu0 0.0
      %1211 = vmatpush1.msra.mxu0 0.0
      %1212 = vmatprep.subr.mxu0 0.0
      %1213 = vmatpush1.msra.mxu0 0.0
      %1214 = vmatprep.subr.mxu0 0.0
      %1215 = vmatpush1.msra.mxu0 0.0
      %1216 = vmatprep.subr.mxu0 0.0
      %1217 = vmatpush1.msra.mxu0 0.0
      %1218 = vmatprep.subr.mxu0 0.0
      %1219 = vmatpush1.msra.mxu0 0.0
      %1220 = vmatprep.subr.mxu0 0.0
      %1221 = vmatpush1.msra.mxu0 0.0
      %1222 = vmatprep.subr.mxu0 0.0
      %1223 = vmatpush1.msra.mxu0 0.0
      %1224 = vmatprep.subr.mxu0 0.0
      %1225 = vmatpush1.msra.mxu0 0.0
      %1226 = vmatprep.subr.mxu0 0.0
      %1227 = vmatpush1.msra.mxu0 0.0
      %1228 = vmatprep.subr.mxu0 0.0
      %1229 = vmatpush1.msra.mxu0 0.0
      %1230 = vmatprep.subr.mxu0 0.0
      %1231 = vmatpush1.msra.mxu0 0.0
      %1232 = vmatprep.subr.mxu0 0.0
      %1233 = vmatpush1.msra.mxu0 0.0
      %1234 = vmatprep.subr.mxu0 0.0
      %1235 = vmatpush1.msra.mxu0 0.0
      %1236 = vmatprep.subr.mxu0 0.0
      %1237 = vmatpush1.msra.mxu0 0.0
      %1238 = vmatprep.subr.mxu0 0.0
      %1239 = vmatpush1.msra.mxu0 0.0
      %1240 = vmatprep.subr.mxu0 0.0
      %1241 = vmatpush1.msra.mxu0 0.0
      %1242 = vmatprep.subr.mxu0 0.0
      %1243 = vmatpush1.msra.mxu0 0.0
      %1244 = vmatprep.subr.mxu0 0.0
      %1245 = vmatpush1.msra.mxu0 0.0
      %1246 = vmatprep.subr.mxu0 0.0
      %1247 = vmatpush1.msra.mxu0 0.0
      %1248 = vmatprep.subr.mxu0 0.0
      %1249 = vmatpush1.msra.mxu0 0.0
      %1250 = vmatprep.mubr.f32.mxu0 0.0
      %1251 = vmatmul.mubr.f32.gmra.mrb[0].mxu0 %v1163
      %v1252 = vpop.f32.mrb[0].mxu0
      %v1253 = vadd.f32 0.0, %v1252
      %v1254 = vpop.f32.mrb[0].mxu0
      %1255 = vmatprep.mubr.f32.mxu0 0.0
      %1256 = vmatmul.mubr.f32.gmra.mrb[0].mxu0 %v1166
      %v1257 = vpop.f32.mrb[0].mxu0
      %v1258 = vadd.f32 0.0, %v1257
      %v1259 = vpop.f32.mrb[0].mxu0
      %1260 = vmatprep.mubr.f32.mxu0 0.0
      %1261 = vmatmul.mubr.f32.gmra.mrb[0].mxu0 %v1169
      %v1262 = vpop.f32.mrb[0].mxu0
      %v1263 = vadd.f32 0.0, %v1262
      %v1264 = vpop.f32.mrb[0].mxu0
      %1265 = vmatprep.mubr.f32.mxu0 0.0
      %1266 = vmatmul.mubr.f32.gmra.mrb[0].mxu0 %v1172
      %v1267 = vpop.f32.mrb[0].mxu0
      %v1268 = vadd.f32 0.0, %v1267
      %v1269 = vpop.f32.mrb[0].mxu0
      %1270 = vmatprep.mubr.f32.mxu0 0.0
      %1271 = vmatmul.mubr.f32.gmra.mrb[0].mxu0 %v1175
      %v1272 = vpop.f32.mrb[0].mxu0
      %v1273 = vadd.f32 0.0, %v1272
      %v1274 = vpop.f32.mrb[0].mxu0
      %1275 = vmatprep.mubr.f32.mxu0 0.0
      %1276 = vmatmul.mubr.f32.gmra.mrb[0].mxu0 %v1178
      %v1277 = vpop.f32.mrb[0].mxu0
      %v1278 = vadd.f32 0.0, %v1277
      %v1279 = vpop.f32.mrb[0].mxu0
      %1280 = vmatprep.mubr.f32.mxu0 0.0
      %1281 = vmatmul.mubr.f32.gmra.mrb[0].mxu0 %v1181
      %v1282 = vpop.f32.mrb[0].mxu0
      %v1283 = vadd.f32 0.0, %v1282
      %v1284 = vpop.f32.mrb[0].mxu0
      %1285 = vmatprep.mubr.f32.mxu0 0.0
      %1286 = vmatmul.mubr.f32.gmra.mrb[0].mxu0 %v1184
      %v1287 = vpop.f32.mrb[0].mxu0
      %v1288 = vadd.f32 0.0, %v1287
      %v1289 = vpop.f32.mrb[0].mxu0
      %1290 = vdwg.mxu0
      %v1291 = vadd.f32 %v1143, %v1253
      %v1292 = vadd.f32 %v1144, %v1258
      %v1293 = vadd.f32 %v1145, %v1263
      %v1294 = vadd.f32 %v1146, %v1268
      %v1295 = vadd.f32 %v1147, %v1273
      %v1296 = vadd.f32 %v1148, %v1278
      %v1297 = vadd.f32 %v1149, %v1283
      %v1298 = vadd.f32 %v1150, %v1288
      %v1299 = vld [vmem:[#allocation2 + $0x11] sm:$0xff]
      %v1300 = vld [vmem:[#allocation2 + $0x19] sm:$0xff]
      %v1301 = vld [vmem:[#allocation2 + $0x21] sm:$0xff]
      %v1302 = vld [vmem:[#allocation2 + $0x29] sm:$0xff]
      %v1303 = vld [vmem:[#allocation2 + $0x31] sm:$0xff]
      %v1304 = vld [vmem:[#allocation2 + $0x39] sm:$0xff]
      %v1305 = vld [vmem:[#allocation2 + $0x41] sm:$0xff]
      %v1306 = vld [vmem:[#allocation2 + $0x49] sm:$0xff]
      %v1307 = vsel %vm839, %v1299, 0.0
      %v1308 = vsel %vm840, %v1300, 0.0
      %v1309 = vsel %vm841, %v1301, 0.0
      %v1310 = vsel %vm842, %v1302, 0.0
      %v1311 = vsel %vm843, %v1303, 0.0
      %v1312 = vsel %vm844, %v1304, 0.0
      %v1313 = vsel %vm845, %v1305, 0.0
      %v1314 = vsel %vm846, %v1306, 0.0
      %s1315 = scalar_lea.vmem %s3, 80
      %v1316 = vld [vmem:[%s1315] sm:$0xff]
      %v1317 = vld [vmem:[%s1315 + $0x8] sm:$0xff]
      %v1319 = vsel %vm386, %v1307, 0
      %v1322 = vsel %vm386, %v1308, 0
      %v1325 = vsel %vm386, %v1309, 0
      %v1328 = vsel %vm386, %v1310, 0
      %v1331 = vsel %vm386, %v1311, 0
      %v1334 = vsel %vm386, %v1312, 0
      %v1337 = vsel %vm386, %v1313, 0
      %v1340 = vsel %vm386, %v1314, 0
      %1342 = vmatprep.subr.mxu0 0.0
      %1343 = vmatpush1.msra.mxu0 %v1316
      %1344 = vmatprep.subr.mxu0 0.0
      %1345 = vmatpush1.msra.mxu0 %v1317
      %1346 = vmatprep.subr.mxu0 0.0
      %1347 = vmatpush1.msra.mxu0 0.0
      %1348 = vmatprep.subr.mxu0 0.0
      %1349 = vmatpush1.msra.mxu0 0.0
      %1350 = vmatprep.subr.mxu0 0.0
      %1351 = vmatpush1.msra.mxu0 0.0
      %1352 = vmatprep.subr.mxu0 0.0
      %1353 = vmatpush1.msra.mxu0 0.0
      %1354 = vmatprep.subr.mxu0 0.0
      %1355 = vmatpush1.msra.mxu0 0.0
      %1356 = vmatprep.subr.mxu0 0.0
      %1357 = vmatpush1.msra.mxu0 0.0
      %1358 = vmatprep.subr.mxu0 0.0
      %1359 = vmatpush1.msra.mxu0 0.0
      %1360 = vmatprep.subr.mxu0 0.0
      %1361 = vmatpush1.msra.mxu0 0.0
      %1362 = vmatprep.subr.mxu0 0.0
      %1363 = vmatpush1.msra.mxu0 0.0
      %1364 = vmatprep.subr.mxu0 0.0
      %1365 = vmatpush1.msra.mxu0 0.0
      %1366 = vmatprep.subr.mxu0 0.0
      %1367 = vmatpush1.msra.mxu0 0.0
      %1368 = vmatprep.subr.mxu0 0.0
      %1369 = vmatpush1.msra.mxu0 0.0
      %1370 = vmatprep.subr.mxu0 0.0
      %1371 = vmatpush1.msra.mxu0 0.0
      %1372 = vmatprep.subr.mxu0 0.0
      %1373 = vmatpush1.msra.mxu0 0.0
      %1374 = vmatprep.subr.mxu0 0.0
      %1375 = vmatpush1.msra.mxu0 0.0
      %1376 = vmatprep.subr.mxu0 0.0
      %1377 = vmatpush1.msra.mxu0 0.0
      %1378 = vmatprep.subr.mxu0 0.0
      %1379 = vmatpush1.msra.mxu0 0.0
      %1380 = vmatprep.subr.mxu0 0.0
      %1381 = vmatpush1.msra.mxu0 0.0
      %1382 = vmatprep.subr.mxu0 0.0
      %1383 = vmatpush1.msra.mxu0 0.0
      %1384 = vmatprep.subr.mxu0 0.0
      %1385 = vmatpush1.msra.mxu0 0.0
      %1386 = vmatprep.subr.mxu0 0.0
      %1387 = vmatpush1.msra.mxu0 0.0
      %1388 = vmatprep.subr.mxu0 0.0
      %1389 = vmatpush1.msra.mxu0 0.0
      %1390 = vmatprep.subr.mxu0 0.0
      %1391 = vmatpush1.msra.mxu0 0.0
      %1392 = vmatprep.subr.mxu0 0.0
      %1393 = vmatpush1.msra.mxu0 0.0
      %1394 = vmatprep.subr.mxu0 0.0
      %1395 = vmatpush1.msra.mxu0 0.0
      %1396 = vmatprep.subr.mxu0 0.0
      %1397 = vmatpush1.msra.mxu0 0.0
      %1398 = vmatprep.subr.mxu0 0.0
      %1399 = vmatpush1.msra.mxu0 0.0
      %1400 = vmatprep.subr.mxu0 0.0
      %1401 = vmatpush1.msra.mxu0 0.0
      %1402 = vmatprep.subr.mxu0 0.0
      %1403 = vmatpush1.msra.mxu0 0.0
      %1404 = vmatprep.subr.mxu0 0.0
      %1405 = vmatpush1.msra.mxu0 0.0
      %1406 = vmatprep.mubr.f32.mxu0 0.0
      %1407 = vmatmul.mubr.f32.gmra.mrb[0].mxu0 %v1319
      %v1408 = vpop.f32.mrb[0].mxu0
      %v1409 = vadd.f32 0.0, %v1408
      %v1410 = vpop.f32.mrb[0].mxu0
      %1411 = vmatprep.mubr.f32.mxu0 0.0
      %1412 = vmatmul.mubr.f32.gmra.mrb[0].mxu0 %v1322
      %v1413 = vpop.f32.mrb[0].mxu0
      %v1414 = vadd.f32 0.0, %v1413
      %v1415 = vpop.f32.mrb[0].mxu0
      %1416 = vmatprep.mubr.f32.mxu0 0.0
      %1417 = vmatmul.mubr.f32.gmra.mrb[0].mxu0 %v1325
      %v1418 = vpop.f32.mrb[0].mxu0
      %v1419 = vadd.f32 0.0, %v1418
      %v1420 = vpop.f32.mrb[0].mxu0
      %1421 = vmatprep.mubr.f32.mxu0 0.0
      %1422 = vmatmul.mubr.f32.gmra.mrb[0].mxu0 %v1328
      %v1423 = vpop.f32.mrb[0].mxu0
      %v1424 = vadd.f32 0.0, %v1423
      %v1425 = vpop.f32.mrb[0].mxu0
      %1426 = vmatprep.mubr.f32.mxu0 0.0
      %1427 = vmatmul.mubr.f32.gmra.mrb[0].mxu0 %v1331
      %v1428 = vpop.f32.mrb[0].mxu0
      %v1429 = vadd.f32 0.0, %v1428
      %v1430 = vpop.f32.mrb[0].mxu0
      %1431 = vmatprep.mubr.f32.mxu0 0.0
      %1432 = vmatmul.mubr.f32.gmra.mrb[0].mxu0 %v1334
      %v1433 = vpop.f32.mrb[0].mxu0
      %v1434 = vadd.f32 0.0, %v1433
      %v1435 = vpop.f32.mrb[0].mxu0
      %1436 = vmatprep.mubr.f32.mxu0 0.0
      %1437 = vmatmul.mubr.f32.gmra.mrb[0].mxu0 %v1337
      %v1438 = vpop.f32.mrb[0].mxu0
      %v1439 = vadd.f32 0.0, %v1438
      %v1440 = vpop.f32.mrb[0].mxu0
      %1441 = vmatprep.mubr.f32.mxu0 0.0
      %1442 = vmatmul.mubr.f32.gmra.mrb[0].mxu0 %v1340
      %v1443 = vpop.f32.mrb[0].mxu0
      %v1444 = vadd.f32 0.0, %v1443
      %v1445 = vpop.f32.mrb[0].mxu0
      %1446 = vdwg.mxu0
      %v1447 = vadd.f32 %v1291, %v1409
      %v1448 = vadd.f32 %v1292, %v1414
      %v1449 = vadd.f32 %v1293, %v1419
      %v1450 = vadd.f32 %v1294, %v1424
      %v1451 = vadd.f32 %v1295, %v1429
      %v1452 = vadd.f32 %v1296, %v1434
      %v1453 = vadd.f32 %v1297, %v1439
      %v1454 = vadd.f32 %v1298, %v1444
      %v1455 = vld [vmem:[#allocation2 + $0x17] sm:$0xff]
      %v1456 = vld [vmem:[#allocation2 + $0x1f] sm:$0xff]
      %v1457 = vld [vmem:[#allocation2 + $0x27] sm:$0xff]
      %v1458 = vld [vmem:[#allocation2 + $0x2f] sm:$0xff]
      %v1459 = vld [vmem:[#allocation2 + $0x37] sm:$0xff]
      %v1460 = vld [vmem:[#allocation2 + $0x3f] sm:$0xff]
      %v1461 = vld [vmem:[#allocation2 + $0x47] sm:$0xff]
      %v1462 = vld [vmem:[#allocation2 + $0x4f] sm:$0xff]
      %v1463 = vsel %vm528, %v1455, 0.0
      %v1464 = vsel %vm529, %v1456, 0.0
      %v1465 = vsel %vm530, %v1457, 0.0
      %v1466 = vsel %vm531, %v1458, 0.0
      %v1467 = vsel %vm532, %v1459, 0.0
      %v1468 = vsel %vm533, %v1460, 0.0
      %v1469 = vsel %vm534, %v1461, 0.0
      %v1470 = vsel %vm535, %v1462, 0.0
      %s1471 = scalar_lea.vmem %s3, 96
      %v1472 = vld [vmem:[%s1471] sm:$0xff]
      %v1473 = vld [vmem:[%s1471 + $0x8] sm:$0xff]
      %v1475 = vsel %vm386, %v1463, 0
      %v1478 = vsel %vm386, %v1464, 0
      %v1481 = vsel %vm386, %v1465, 0
      %v1484 = vsel %vm386, %v1466, 0
      %v1487 = vsel %vm386, %v1467, 0
      %v1490 = vsel %vm386, %v1468, 0
      %v1493 = vsel %vm386, %v1469, 0
      %v1496 = vsel %vm386, %v1470, 0
      %1498 = vmatprep.subr.mxu0 0.0
      %1499 = vmatpush1.msra.mxu0 %v1472
      %1500 = vmatprep.subr.mxu0 0.0
      %1501 = vmatpush1.msra.mxu0 %v1473
      %1502 = vmatprep.subr.mxu0 0.0
      %1503 = vmatpush1.msra.mxu0 0.0
      %1504 = vmatprep.subr.mxu0 0.0
      %1505 = vmatpush1.msra.mxu0 0.0
      %1506 = vmatprep.subr.mxu0 0.0
      %1507 = vmatpush1.msra.mxu0 0.0
      %1508 = vmatprep.subr.mxu0 0.0
      %1509 = vmatpush1.msra.mxu0 0.0
      %1510 = vmatprep.subr.mxu0 0.0
      %1511 = vmatpush1.msra.mxu0 0.0
      %1512 = vmatprep.subr.mxu0 0.0
      %1513 = vmatpush1.msra.mxu0 0.0
      %1514 = vmatprep.subr.mxu0 0.0
      %1515 = vmatpush1.msra.mxu0 0.0
      %1516 = vmatprep.subr.mxu0 0.0
      %1517 = vmatpush1.msra.mxu0 0.0
      %1518 = vmatprep.subr.mxu0 0.0
      %1519 = vmatpush1.msra.mxu0 0.0
      %1520 = vmatprep.subr.mxu0 0.0
      %1521 = vmatpush1.msra.mxu0 0.0
      %1522 = vmatprep.subr.mxu0 0.0
      %1523 = vmatpush1.msra.mxu0 0.0
      %1524 = vmatprep.subr.mxu0 0.0
      %1525 = vmatpush1.msra.mxu0 0.0
      %1526 = vmatprep.subr.mxu0 0.0
      %1527 = vmatpush1.msra.mxu0 0.0
      %1528 = vmatprep.subr.mxu0 0.0
      %1529 = vmatpush1.msra.mxu0 0.0
      %1530 = vmatprep.subr.mxu0 0.0
      %1531 = vmatpush1.msra.mxu0 0.0
      %1532 = vmatprep.subr.mxu0 0.0
      %1533 = vmatpush1.msra.mxu0 0.0
      %1534 = vmatprep.subr.mxu0 0.0
      %1535 = vmatpush1.msra.mxu0 0.0
      %1536 = vmatprep.subr.mxu0 0.0
      %1537 = vmatpush1.msra.mxu0 0.0
      %1538 = vmatprep.subr.mxu0 0.0
      %1539 = vmatpush1.msra.mxu0 0.0
      %1540 = vmatprep.subr.mxu0 0.0
      %1541 = vmatpush1.msra.mxu0 0.0
      %1542 = vmatprep.subr.mxu0 0.0
      %1543 = vmatpush1.msra.mxu0 0.0
      %1544 = vmatprep.subr.mxu0 0.0
      %1545 = vmatpush1.msra.mxu0 0.0
      %1546 = vmatprep.subr.mxu0 0.0
      %1547 = vmatpush1.msra.mxu0 0.0
      %1548 = vmatprep.subr.mxu0 0.0
      %1549 = vmatpush1.msra.mxu0 0.0
      %1550 = vmatprep.subr.mxu0 0.0
      %1551 = vmatpush1.msra.mxu0 0.0
      %1552 = vmatprep.subr.mxu0 0.0
      %1553 = vmatpush1.msra.mxu0 0.0
      %1554 = vmatprep.subr.mxu0 0.0
      %1555 = vmatpush1.msra.mxu0 0.0
      %1556 = vmatprep.subr.mxu0 0.0
      %1557 = vmatpush1.msra.mxu0 0.0
      %1558 = vmatprep.subr.mxu0 0.0
      %1559 = vmatpush1.msra.mxu0 0.0
      %1560 = vmatprep.subr.mxu0 0.0
      %1561 = vmatpush1.msra.mxu0 0.0
      %1562 = vmatprep.mubr.f32.mxu0 0.0
      %1563 = vmatmul.mubr.f32.gmra.mrb[0].mxu0 %v1475
      %v1564 = vpop.f32.mrb[0].mxu0
      %v1565 = vadd.f32 0.0, %v1564
      %v1566 = vpop.f32.mrb[0].mxu0
      %1567 = vmatprep.mubr.f32.mxu0 0.0
      %1568 = vmatmul.mubr.f32.gmra.mrb[0].mxu0 %v1478
      %v1569 = vpop.f32.mrb[0].mxu0
      %v1570 = vadd.f32 0.0, %v1569
      %v1571 = vpop.f32.mrb[0].mxu0
      %1572 = vmatprep.mubr.f32.mxu0 0.0
      %1573 = vmatmul.mubr.f32.gmra.mrb[0].mxu0 %v1481
      %v1574 = vpop.f32.mrb[0].mxu0
      %v1575 = vadd.f32 0.0, %v1574
      %v1576 = vpop.f32.mrb[0].mxu0
      %1577 = vmatprep.mubr.f32.mxu0 0.0
      %1578 = vmatmul.mubr.f32.gmra.mrb[0].mxu0 %v1484
      %v1579 = vpop.f32.mrb[0].mxu0
      %v1580 = vadd.f32 0.0, %v1579
      %v1581 = vpop.f32.mrb[0].mxu0
      %1582 = vmatprep.mubr.f32.mxu0 0.0
      %1583 = vmatmul.mubr.f32.gmra.mrb[0].mxu0 %v1487
      %v1584 = vpop.f32.mrb[0].mxu0
      %v1585 = vadd.f32 0.0, %v1584
      %v1586 = vpop.f32.mrb[0].mxu0
      %1587 = vmatprep.mubr.f32.mxu0 0.0
      %1588 = vmatmul.mubr.f32.gmra.mrb[0].mxu0 %v1490
      %v1589 = vpop.f32.mrb[0].mxu0
      %v1590 = vadd.f32 0.0, %v1589
      %v1591 = vpop.f32.mrb[0].mxu0
      %1592 = vmatprep.mubr.f32.mxu0 0.0
      %1593 = vmatmul.mubr.f32.gmra.mrb[0].mxu0 %v1493
      %v1594 = vpop.f32.mrb[0].mxu0
      %v1595 = vadd.f32 0.0, %v1594
      %v1596 = vpop.f32.mrb[0].mxu0
      %1597 = vmatprep.mubr.f32.mxu0 0.0
      %1598 = vmatmul.mubr.f32.gmra.mrb[0].mxu0 %v1496
      %v1599 = vpop.f32.mrb[0].mxu0
      %v1600 = vadd.f32 0.0, %v1599
      %v1601 = vpop.f32.mrb[0].mxu0
      %1602 = vdwg.mxu0
      %v1603 = vadd.f32 %v1447, %v1565
      %v1604 = vadd.f32 %v1448, %v1570
      %v1605 = vadd.f32 %v1449, %v1575
      %v1606 = vadd.f32 %v1450, %v1580
      %v1607 = vadd.f32 %v1451, %v1585
      %v1608 = vadd.f32 %v1452, %v1590
      %v1609 = vadd.f32 %v1453, %v1595
      %v1610 = vadd.f32 %v1454, %v1600
      %v1611 = vld [vmem:[#allocation2 + $0x18] sm:$0xff]
      %v1612 = vld [vmem:[#allocation2 + $0x20] sm:$0xff]
      %v1613 = vld [vmem:[#allocation2 + $0x28] sm:$0xff]
      %v1614 = vld [vmem:[#allocation2 + $0x30] sm:$0xff]
      %v1615 = vld [vmem:[#allocation2 + $0x38] sm:$0xff]
      %v1616 = vld [vmem:[#allocation2 + $0x40] sm:$0xff]
      %v1617 = vld [vmem:[#allocation2 + $0x48] sm:$0xff]
      %v1618 = vld [vmem:[#allocation2 + $0x50] sm:$0xff]
      %s1619 = scalar_lea.vmem %s3, 112
      %v1620 = vld [vmem:[%s1619] sm:$0xff]
      %v1621 = vld [vmem:[%s1619 + $0x8] sm:$0xff]
      %v1623 = vsel %vm386, %v1611, 0
      %v1626 = vsel %vm386, %v1612, 0
      %v1629 = vsel %vm386, %v1613, 0
      %v1632 = vsel %vm386, %v1614, 0
      %v1635 = vsel %vm386, %v1615, 0
      %v1638 = vsel %vm386, %v1616, 0
      %v1641 = vsel %vm386, %v1617, 0
      %v1644 = vsel %vm386, %v1618, 0
      %1646 = vmatprep.subr.mxu0 0.0
      %1647 = vmatpush1.msra.mxu0 %v1620
      %1648 = vmatprep.subr.mxu0 0.0
      %1649 = vmatpush1.msra.mxu0 %v1621
      %1650 = vmatprep.subr.mxu0 0.0
      %1651 = vmatpush1.msra.mxu0 0.0
      %1652 = vmatprep.subr.mxu0 0.0
      %1653 = vmatpush1.msra.mxu0 0.0
      %1654 = vmatprep.subr.mxu0 0.0
      %1655 = vmatpush1.msra.mxu0 0.0
      %1656 = vmatprep.subr.mxu0 0.0
      %1657 = vmatpush1.msra.mxu0 0.0
      %1658 = vmatprep.subr.mxu0 0.0
      %1659 = vmatpush1.msra.mxu0 0.0
      %1660 = vmatprep.subr.mxu0 0.0
      %1661 = vmatpush1.msra.mxu0 0.0
      %1662 = vmatprep.subr.mxu0 0.0
      %1663 = vmatpush1.msra.mxu0 0.0
      %1664 = vmatprep.subr.mxu0 0.0
      %1665 = vmatpush1.msra.mxu0 0.0
      %1666 = vmatprep.subr.mxu0 0.0
      %1667 = vmatpush1.msra.mxu0 0.0
      %1668 = vmatprep.subr.mxu0 0.0
      %1669 = vmatpush1.msra.mxu0 0.0
      %1670 = vmatprep.subr.mxu0 0.0
      %1671 = vmatpush1.msra.mxu0 0.0
      %1672 = vmatprep.subr.mxu0 0.0
      %1673 = vmatpush1.msra.mxu0 0.0
      %1674 = vmatprep.subr.mxu0 0.0
      %1675 = vmatpush1.msra.mxu0 0.0
      %1676 = vmatprep.subr.mxu0 0.0
      %1677 = vmatpush1.msra.mxu0 0.0
      %1678 = vmatprep.subr.mxu0 0.0
      %1679 = vmatpush1.msra.mxu0 0.0
      %1680 = vmatprep.subr.mxu0 0.0
      %1681 = vmatpush1.msra.mxu0 0.0
      %1682 = vmatprep.subr.mxu0 0.0
      %1683 = vmatpush1.msra.mxu0 0.0
      %1684 = vmatprep.subr.mxu0 0.0
      %1685 = vmatpush1.msra.mxu0 0.0
      %1686 = vmatprep.subr.mxu0 0.0
      %1687 = vmatpush1.msra.mxu0 0.0
      %1688 = vmatprep.subr.mxu0 0.0
      %1689 = vmatpush1.msra.mxu0 0.0
      %1690 = vmatprep.subr.mxu0 0.0
      %1691 = vmatpush1.msra.mxu0 0.0
      %1692 = vmatprep.subr.mxu0 0.0
      %1693 = vmatpush1.msra.mxu0 0.0
      %1694 = vmatprep.subr.mxu0 0.0
      %1695 = vmatpush1.msra.mxu0 0.0
      %1696 = vmatprep.subr.mxu0 0.0
      %1697 = vmatpush1.msra.mxu0 0.0
      %1698 = vmatprep.subr.mxu0 0.0
      %1699 = vmatpush1.msra.mxu0 0.0
      %1700 = vmatprep.subr.mxu0 0.0
      %1701 = vmatpush1.msra.mxu0 0.0
      %1702 = vmatprep.subr.mxu0 0.0
      %1703 = vmatpush1.msra.mxu0 0.0
      %1704 = vmatprep.subr.mxu0 0.0
      %1705 = vmatpush1.msra.mxu0 0.0
      %1706 = vmatprep.subr.mxu0 0.0
      %1707 = vmatpush1.msra.mxu0 0.0
      %1708 = vmatprep.subr.mxu0 0.0
      %1709 = vmatpush1.msra.mxu0 0.0
      %1710 = vmatprep.mubr.f32.mxu0 0.0
      %1711 = vmatmul.mubr.f32.gmra.mrb[0].mxu0 %v1623
      %v1712 = vpop.f32.mrb[0].mxu0
      %v1713 = vadd.f32 0.0, %v1712
      %v1714 = vpop.f32.mrb[0].mxu0
      %1715 = vmatprep.mubr.f32.mxu0 0.0
      %1716 = vmatmul.mubr.f32.gmra.mrb[0].mxu0 %v1626
      %v1717 = vpop.f32.mrb[0].mxu0
      %v1718 = vadd.f32 0.0, %v1717
      %v1719 = vpop.f32.mrb[0].mxu0
      %1720 = vmatprep.mubr.f32.mxu0 0.0
      %1721 = vmatmul.mubr.f32.gmra.mrb[0].mxu0 %v1629
      %v1722 = vpop.f32.mrb[0].mxu0
      %v1723 = vadd.f32 0.0, %v1722
      %v1724 = vpop.f32.mrb[0].mxu0
      %1725 = vmatprep.mubr.f32.mxu0 0.0
      %1726 = vmatmul.mubr.f32.gmra.mrb[0].mxu0 %v1632
      %v1727 = vpop.f32.mrb[0].mxu0
      %v1728 = vadd.f32 0.0, %v1727
      %v1729 = vpop.f32.mrb[0].mxu0
      %1730 = vmatprep.mubr.f32.mxu0 0.0
      %1731 = vmatmul.mubr.f32.gmra.mrb[0].mxu0 %v1635
      %v1732 = vpop.f32.mrb[0].mxu0
      %v1733 = vadd.f32 0.0, %v1732
      %v1734 = vpop.f32.mrb[0].mxu0
      %1735 = vmatprep.mubr.f32.mxu0 0.0
      %1736 = vmatmul.mubr.f32.gmra.mrb[0].mxu0 %v1638
      %v1737 = vpop.f32.mrb[0].mxu0
      %v1738 = vadd.f32 0.0, %v1737
      %v1739 = vpop.f32.mrb[0].mxu0
      %1740 = vmatprep.mubr.f32.mxu0 0.0
      %1741 = vmatmul.mubr.f32.gmra.mrb[0].mxu0 %v1641
      %v1742 = vpop.f32.mrb[0].mxu0
      %v1743 = vadd.f32 0.0, %v1742
      %v1744 = vpop.f32.mrb[0].mxu0
      %1745 = vmatprep.mubr.f32.mxu0 0.0
      %1746 = vmatmul.mubr.f32.gmra.mrb[0].mxu0 %v1644
      %v1747 = vpop.f32.mrb[0].mxu0
      %v1748 = vadd.f32 0.0, %v1747
      %v1749 = vpop.f32.mrb[0].mxu0
      %1750 = vdwg.mxu0
      %v1751 = vadd.f32 %v1603, %v1713
      %v1752 = vadd.f32 %v1604, %v1718
      %v1753 = vadd.f32 %v1605, %v1723
      %v1754 = vadd.f32 %v1606, %v1728
      %v1755 = vadd.f32 %v1607, %v1733
      %v1756 = vadd.f32 %v1608, %v1738
      %v1757 = vadd.f32 %v1609, %v1743
      %v1758 = vadd.f32 %v1610, %v1748
      %v1759 = vld [vmem:[#allocation2 + $0x19] sm:$0xff]
      %v1760 = vld [vmem:[#allocation2 + $0x21] sm:$0xff]
      %v1761 = vld [vmem:[#allocation2 + $0x29] sm:$0xff]
      %v1762 = vld [vmem:[#allocation2 + $0x31] sm:$0xff]
      %v1763 = vld [vmem:[#allocation2 + $0x39] sm:$0xff]
      %v1764 = vld [vmem:[#allocation2 + $0x41] sm:$0xff]
      %v1765 = vld [vmem:[#allocation2 + $0x49] sm:$0xff]
      %v1766 = vld [vmem:[#allocation2 + $0x51] sm:$0xff]
      %v1767 = vsel %vm839, %v1759, 0.0
      %v1768 = vsel %vm840, %v1760, 0.0
      %v1769 = vsel %vm841, %v1761, 0.0
      %v1770 = vsel %vm842, %v1762, 0.0
      %v1771 = vsel %vm843, %v1763, 0.0
      %v1772 = vsel %vm844, %v1764, 0.0
      %v1773 = vsel %vm845, %v1765, 0.0
      %v1774 = vsel %vm846, %v1766, 0.0
      %s1775 = scalar_lea.vmem %s3, 128
      %v1776 = vld [vmem:[%s1775] sm:$0xff]
      %v1777 = vld [vmem:[%s1775 + $0x8] sm:$0xff]
      %v1779 = vsel %vm386, %v1767, 0
      %v1782 = vsel %vm386, %v1768, 0
      %v1785 = vsel %vm386, %v1769, 0
      %v1788 = vsel %vm386, %v1770, 0
      %v1791 = vsel %vm386, %v1771, 0
      %v1794 = vsel %vm386, %v1772, 0
      %v1797 = vsel %vm386, %v1773, 0
      %v1800 = vsel %vm386, %v1774, 0
      %1802 = vmatprep.subr.mxu0 0.0
      %1803 = vmatpush1.msra.mxu0 %v1776
      %1804 = vmatprep.subr.mxu0 0.0
      %1805 = vmatpush1.msra.mxu0 %v1777
      %1806 = vmatprep.subr.mxu0 0.0
      %1807 = vmatpush1.msra.mxu0 0.0
      %1808 = vmatprep.subr.mxu0 0.0
      %1809 = vmatpush1.msra.mxu0 0.0
      %1810 = vmatprep.subr.mxu0 0.0
      %1811 = vmatpush1.msra.mxu0 0.0
      %1812 = vmatprep.subr.mxu0 0.0
      %1813 = vmatpush1.msra.mxu0 0.0
      %1814 = vmatprep.subr.mxu0 0.0
      %1815 = vmatpush1.msra.mxu0 0.0
      %1816 = vmatprep.subr.mxu0 0.0
      %1817 = vmatpush1.msra.mxu0 0.0
      %1818 = vmatprep.subr.mxu0 0.0
      %1819 = vmatpush1.msra.mxu0 0.0
      %1820 = vmatprep.subr.mxu0 0.0
      %1821 = vmatpush1.msra.mxu0 0.0
      %1822 = vmatprep.subr.mxu0 0.0
      %1823 = vmatpush1.msra.mxu0 0.0
      %1824 = vmatprep.subr.mxu0 0.0
      %1825 = vmatpush1.msra.mxu0 0.0
      %1826 = vmatprep.subr.mxu0 0.0
      %1827 = vmatpush1.msra.mxu0 0.0
      %1828 = vmatprep.subr.mxu0 0.0
      %1829 = vmatpush1.msra.mxu0 0.0
      %1830 = vmatprep.subr.mxu0 0.0
      %1831 = vmatpush1.msra.mxu0 0.0
      %1832 = vmatprep.subr.mxu0 0.0
      %1833 = vmatpush1.msra.mxu0 0.0
      %1834 = vmatprep.subr.mxu0 0.0
      %1835 = vmatpush1.msra.mxu0 0.0
      %1836 = vmatprep.subr.mxu0 0.0
      %1837 = vmatpush1.msra.mxu0 0.0
      %1838 = vmatprep.subr.mxu0 0.0
      %1839 = vmatpush1.msra.mxu0 0.0
      %1840 = vmatprep.subr.mxu0 0.0
      %1841 = vmatpush1.msra.mxu0 0.0
      %1842 = vmatprep.subr.mxu0 0.0
      %1843 = vmatpush1.msra.mxu0 0.0
      %1844 = vmatprep.subr.mxu0 0.0
      %1845 = vmatpush1.msra.mxu0 0.0
      %1846 = vmatprep.subr.mxu0 0.0
      %1847 = vmatpush1.msra.mxu0 0.0
      %1848 = vmatprep.subr.mxu0 0.0
      %1849 = vmatpush1.msra.mxu0 0.0
      %1850 = vmatprep.subr.mxu0 0.0
      %1851 = vmatpush1.msra.mxu0 0.0
      %1852 = vmatprep.subr.mxu0 0.0
      %1853 = vmatpush1.msra.mxu0 0.0
      %1854 = vmatprep.subr.mxu0 0.0
      %1855 = vmatpush1.msra.mxu0 0.0
      %1856 = vmatprep.subr.mxu0 0.0
      %1857 = vmatpush1.msra.mxu0 0.0
      %1858 = vmatprep.subr.mxu0 0.0
      %1859 = vmatpush1.msra.mxu0 0.0
      %1860 = vmatprep.subr.mxu0 0.0
      %1861 = vmatpush1.msra.mxu0 0.0
      %1862 = vmatprep.subr.mxu0 0.0
      %1863 = vmatpush1.msra.mxu0 0.0
      %1864 = vmatprep.subr.mxu0 0.0
      %1865 = vmatpush1.msra.mxu0 0.0
      %1866 = vmatprep.mubr.f32.mxu0 0.0
      %1867 = vmatmul.mubr.f32.gmra.mrb[0].mxu0 %v1779
      %v1868 = vpop.f32.mrb[0].mxu0
      %v1869 = vadd.f32 0.0, %v1868
      %v1870 = vpop.f32.mrb[0].mxu0
      %1871 = vmatprep.mubr.f32.mxu0 0.0
      %1872 = vmatmul.mubr.f32.gmra.mrb[0].mxu0 %v1782
      %v1873 = vpop.f32.mrb[0].mxu0
      %v1874 = vadd.f32 0.0, %v1873
      %v1875 = vpop.f32.mrb[0].mxu0
      %1876 = vmatprep.mubr.f32.mxu0 0.0
      %1877 = vmatmul.mubr.f32.gmra.mrb[0].mxu0 %v1785
      %v1878 = vpop.f32.mrb[0].mxu0
      %v1879 = vadd.f32 0.0, %v1878
      %v1880 = vpop.f32.mrb[0].mxu0
      %1881 = vmatprep.mubr.f32.mxu0 0.0
      %1882 = vmatmul.mubr.f32.gmra.mrb[0].mxu0 %v1788
      %v1883 = vpop.f32.mrb[0].mxu0
      %v1884 = vadd.f32 0.0, %v1883
      %v1885 = vpop.f32.mrb[0].mxu0
      %1886 = vmatprep.mubr.f32.mxu0 0.0
      %1887 = vmatmul.mubr.f32.gmra.mrb[0].mxu0 %v1791
      %v1888 = vpop.f32.mrb[0].mxu0
      %v1889 = vadd.f32 0.0, %v1888
      %v1890 = vpop.f32.mrb[0].mxu0
      %1891 = vmatprep.mubr.f32.mxu0 0.0
      %1892 = vmatmul.mubr.f32.gmra.mrb[0].mxu0 %v1794
      %v1893 = vpop.f32.mrb[0].mxu0
      %v1894 = vadd.f32 0.0, %v1893
      %v1895 = vpop.f32.mrb[0].mxu0
      %1896 = vmatprep.mubr.f32.mxu0 0.0
      %1897 = vmatmul.mubr.f32.gmra.mrb[0].mxu0 %v1797
      %v1898 = vpop.f32.mrb[0].mxu0
      %v1899 = vadd.f32 0.0, %v1898
      %v1900 = vpop.f32.mrb[0].mxu0
      %1901 = vmatprep.mubr.f32.mxu0 0.0
      %1902 = vmatmul.mubr.f32.gmra.mrb[0].mxu0 %v1800
      %v1903 = vpop.f32.mrb[0].mxu0
      %v1904 = vadd.f32 0.0, %v1903
      %v1905 = vpop.f32.mrb[0].mxu0
      %1906 = vdwg.mxu0
      %v1907 = vadd.f32 %v1751, %v1869
      %v1908 = vadd.f32 %v1752, %v1874
      %v1909 = vadd.f32 %v1753, %v1879
      %v1910 = vadd.f32 %v1754, %v1884
      %v1911 = vadd.f32 %v1755, %v1889
      %v1912 = vadd.f32 %v1756, %v1894
      %v1913 = vadd.f32 %v1757, %v1899
      %v1914 = vadd.f32 %v1758, %v1904
      %v1915 = vld [vmem:[%s4] sm:$0x1]
      %v1917 = vlaneseq
      %v1918 = vshrl.u32 %v1917, 7
      %v1919 = vsub.s32 0, %v1918
      %v1920 = vrot.slane %v1915, %v1919
      %v1922 = vadd.f32 %v1907, %v1920
      %v1923 = vadd.f32 %v1908, %v1920
      %v1924 = vadd.f32 %v1909, %v1920
      %v1925 = vadd.f32 %v1910, %v1920
      %v1926 = vadd.f32 %v1911, %v1920
      %v1927 = vadd.f32 %v1912, %v1920
      %v1928 = vadd.f32 %v1913, %v1920
      %v1929 = vadd.f32 %v1914, %v1920
      %v1930 = vmax.f32 %v1922, 0.0
      %v1931 = vmax.f32 %v1923, 0.0
      %v1932 = vmax.f32 %v1924, 0.0
      %v1933 = vmax.f32 %v1925, 0.0
      %v1934 = vmax.f32 %v1926, 0.0
      %v1935 = vmax.f32 %v1927, 0.0
      %v1936 = vmax.f32 %v1928, 0.0
      %v1937 = vmax.f32 %v1929, 0.0
      %1938 = vst.msk [vmem:[%s224] sm:$0xff] %vm386, %v1930
      %1939 = vst.msk [vmem:[%s224 + $0x8] sm:$0xff] %vm386, %v1931
      %1940 = vst.msk [vmem:[%s224 + $0x10] sm:$0xff] %vm386, %v1932
      %1941 = vst.msk [vmem:[%s224 + $0x18] sm:$0xff] %vm386, %v1933
      %1942 = vst.msk [vmem:[%s224 + $0x20] sm:$0xff] %vm386, %v1934
      %1943 = vst.msk [vmem:[%s224 + $0x28] sm:$0xff] %vm386, %v1935
      %1944 = vst.msk [vmem:[%s224 + $0x30] sm:$0xff] %vm386, %v1936
      %1945 = vst.msk [vmem:[%s224 + $0x38] sm:$0xff] %vm386, %v1937
      %p1946 = scmp.lt.s32.totalorder %s16, 1
      %s1947 = scalar_select %p1946, %s16, 1
      %s1948 = smul.addr %s1947, 8
      %s1949 = smul.addr %s1948, 8
      %s1950 = scalar_lea.vmem %s5, %s1949
      // Predicated region
      $region41: #{tpu_custom_call.1} parent=39 // pred_check
        %p1951 = pneg %p144
      $region42: #{tpu_custom_call.1} parent=39 // pred_check_branch
        %1953 = sbr.rel (%p1951) target = $region44
      $region43: #{tpu_custom_call.1} parent=39 // pred_region
        _
      $region44: #{tpu_custom_call.1} parent=39 // pred_fallthru
        _
    $region40: #{tpu_custom_call.1} parent=5 // pred_fallthru
      _
    %p1954 = scmp.le.s32.totalorder 2, %s11
    // Predicated region
    $region45: #{tpu_custom_call.1} parent=5 // pred_check
      %p1955 = pneg %p1954
    $region46: #{tpu_custom_call.1} parent=5 // pred_check_branch
      %1957 = sbr.rel (%p1955) target = $region48
    $region47: #{tpu_custom_call.1} parent=5 // pred_region
      %s1958 = ssub.s32 %s11, 2
      // Predicated region
      $region49: #{tpu_custom_call.1} parent=47 // pred_check
        %p1959 = pneg %p150
      $region50: #{tpu_custom_call.1} parent=47 // pred_check_branch
        %1961 = sbr.rel (%p1959) target = $region52
      $region51: #{tpu_custom_call.1} parent=47 // pred_region
        %p1962 = scmp.lt.s32.totalorder %s17, 1
        %s1963 = scalar_select %p1962, %s17, 1
        %s1964 = smul.addr %s1963, 8
        %s1965 = smul.addr %s1964, 8
        %s1966 = scalar_lea.vmem %s5, %s1965
      $region52: #{tpu_custom_call.1} parent=47 // pred_fallthru
        _
    $region48: #{tpu_custom_call.1} parent=5 // pred_fallthru
      _
  $region6: #{tpu_custom_call.1} parent=0 // loop_footer
    %s15 = sadd.s32 1, %s11
  $region7: #{tpu_custom_call.1} parent=0 // loop_footer_branch
    %10 = sbr.rel target = $region3
  $region8: #{tpu_custom_call.1} parent=0 // loop_exit
    _

</llo_original>
